<compile_context>
chip_gen: v5e
topology: v5e:2x2
jax: 0.10.0
libtpu: 0.0.40
codegen_flags: <defaults>
</compile_context>

<pallas_src>
import jax
import jax.numpy as jnp
from jax.experimental import pallas as pl
from jax.experimental.pallas import tpu as pltpu

LANE = 128


def _round_up(x, m):
    return ((x + m - 1) // m) * m


def mlp_kernel(x_ref, w1_ref, b1_ref, w2_ref, b2_ref, o_ref):
    # x_ref:  (bm, Kp)  bf16     w1_ref: (Kp, H)  bf16    b1_ref: (1, H)  f32
    # w2_ref: (H, Np)   bf16     b2_ref: (1, Np)  f32     o_ref:  (bm, Np) f32
    h = jnp.dot(x_ref[...], w1_ref[...], preferred_element_type=jnp.float32)
    h = jnp.maximum(h + b1_ref[...], 0.0)                       # bias + ReLU in f32
    y = jnp.dot(h.astype(w2_ref.dtype), w2_ref[...],
                preferred_element_type=jnp.float32)
    o_ref[...] = (y + b2_ref[...]).astype(o_ref.dtype)


def mlp_forward(x_nchw, w1, b1, w2, b2, *, bm=512):
    """x_nchw: (B, C, H, W). Mirrors PyTorch `X.reshape(-1, H*W)` exactly."""
    num_inputs = x_nchw.shape[2] * x_nchw.shape[3]
    num_hidden = w1.shape[1]
    num_outputs = w2.shape[1]
    assert w1.shape[0] == num_inputs

    # PyTorch semantics: rows = total_elems // (H*W)  (== B when C == 1).
    x2d = x_nchw.reshape(-1, num_inputs)
    rows = x2d.shape[0]

    # --- padding for clean MXU / vreg layout --------------------------------
    k_pad = _round_up(num_inputs, LANE)      # 784 -> 896 (7 * 128)
    n_pad = _round_up(num_outputs, LANE)     # 10  -> 128 (lane-dense output)
    bm_eff = min(bm, _round_up(rows, 16))    # multiple of 16 (bf16 sublane pack)
    rows_pad = _round_up(rows, bm_eff)

    x_p = jnp.zeros((rows_pad, k_pad), jnp.bfloat16).at[:rows, :num_inputs].set(
        x2d.astype(jnp.bfloat16))
    w1_p = jnp.zeros((k_pad, num_hidden), jnp.bfloat16).at[:num_inputs, :].set(
        w1.astype(jnp.bfloat16))
    w2_p = jnp.zeros((num_hidden, n_pad), jnp.bfloat16).at[:, :num_outputs].set(
        w2.astype(jnp.bfloat16))
    b1_p = b1.reshape(1, num_hidden).astype(jnp.float32)
    b2_p = jnp.zeros((1, n_pad), jnp.float32).at[:, :num_outputs].set(
        b2.reshape(1, num_outputs).astype(jnp.float32))

    grid = (rows_pad // bm_eff,)

    flops = 2 * rows_pad * (k_pad * num_hidden + num_hidden * n_pad)
    bytes_accessed = (x_p.size * 2 + w1_p.size * 2 + w2_p.size * 2
                      + b1_p.size * 4 + b2_p.size * 4 + rows_pad * n_pad * 4)

    out = pl.pallas_call(
        mlp_kernel,
        out_shape=jax.ShapeDtypeStruct((rows_pad, n_pad), jnp.float32),
        grid_spec=pltpu.PrefetchScalarGridSpec(
            num_scalar_prefetch=0,
            grid=grid,
            in_specs=[
                pl.BlockSpec((bm_eff, k_pad), lambda i: (i, 0)),
                # constant-index blocks: weights/biases fetched once, stay resident
                pl.BlockSpec((k_pad, num_hidden), lambda i: (0, 0)),
                pl.BlockSpec((1, num_hidden), lambda i: (0, 0)),
                pl.BlockSpec((num_hidden, n_pad), lambda i: (0, 0)),
                pl.BlockSpec((1, n_pad), lambda i: (0, 0)),
            ],
            out_specs=pl.BlockSpec((bm_eff, n_pad), lambda i: (i, 0)),
        ),
        compiler_params=pltpu.CompilerParams(
            dimension_semantics=("parallel",),   # batch axis shards across TCs (v7x)
        ),
        cost_estimate=pl.CostEstimate(
            flops=flops, transcendentals=0, bytes_accessed=bytes_accessed),
    )(x_p, w1_p, b1_p, w2_p, b2_p)

    # Un-pad: drop padded batch rows and padded output lanes.
    return out[:rows, :num_outputs]


def init_params(key, num_inputs=784, num_hidden=512, num_outputs=10):
    """Deterministic init mimicking nn.Linear default (uniform +/- 1/sqrt(fan_in))."""
    k1, k2, k3, k4 = jax.random.split(key, 4)
    bound1 = 1.0 / jnp.sqrt(num_inputs)
    bound2 = 1.0 / jnp.sqrt(num_hidden)
    # Store weights as (in, out) so the kernel does x @ W (== x @ W_torch.T).
    w1 = jax.random.uniform(k1, (num_inputs, num_hidden), jnp.float32, -bound1, bound1)
    b1 = jax.random.uniform(k2, (num_hidden,), jnp.float32, -bound1, bound1)
    w2 = jax.random.uniform(k3, (num_hidden, num_outputs), jnp.float32, -bound2, bound2)
    b2 = jax.random.uniform(k4, (num_outputs,), jnp.float32, -bound2, bound2)
    return w1, b1, w2, b2


if __name__ == "__main__":
    key = jax.random.PRNGKey(0)
    kx, kp = jax.random.split(key)

    num_inputs, num_hidden, num_outputs = 784, 512, 10
    B, C, H, W = 8, 1, 28, 28  # H*W = 784 = num_inputs; C=1 as the forward implies

    x = jax.random.normal(kx, (B, C, H, W), jnp.float32)
    w1, b1, w2, b2 = init_params(kp, num_inputs, num_hidden, num_outputs)

    y = mlp_forward(x, w1, b1, w2, b2)
    y = jax.block_until_ready(y)

    # Pure-JAX f32 reference; bf16 matmul inputs -> loosened tolerance.
    x2d = x.reshape(-1, num_inputs)
    h_ref = jnp.maximum(x2d @ w1 + b1, 0.0)
    y_ref = h_ref @ w2 + b2
    assert y.shape == (B, num_outputs)
    assert jnp.allclose(y, y_ref, atol=3e-2, rtol=3e-2), "mismatch vs reference"

    print("KERNEL_OK")
</pallas_src>

<mosaic_0001>
module attributes {stable_mosaic.version = 11 : i64} {
  func.func @mlp_kernel(%arg0: i32, %arg1: memref<16x896xbf16, #tpu.memory_space<vmem>>, %arg2: memref<896x512xbf16, #tpu.memory_space<vmem>>, %arg3: memref<1x512xf32, #tpu.memory_space<vmem>>, %arg4: memref<512x128xbf16, #tpu.memory_space<vmem>>, %arg5: memref<1x128xf32, #tpu.memory_space<vmem>>, %arg6: memref<16x128xf32, #tpu.memory_space<vmem>>) attributes {dimension_semantics = [#tpu.dimension_semantics<parallel>], iteration_bounds = array<i64: 1>, scalar_prefetch = 0 : i64, scratch_operands = 0 : i64, tpu.core_type = #tpu.core_type<tc>, window_params = [{transform_indices = @transform_0, window_bounds = array<i64: 16, 896>}, {pipeline_mode = #tpu.pipeline_mode<synchronous>, transform_indices = @transform_1, window_bounds = array<i64: 896, 512>}, {pipeline_mode = #tpu.pipeline_mode<synchronous>, transform_indices = @transform_2, window_bounds = array<i64: 1, 512>}, {pipeline_mode = #tpu.pipeline_mode<synchronous>, transform_indices = @transform_3, window_bounds = array<i64: 512, 128>}, {pipeline_mode = #tpu.pipeline_mode<synchronous>, transform_indices = @transform_4, window_bounds = array<i64: 1, 128>}, {transform_indices = @transform_5, window_bounds = array<i64: 16, 128>}]} {
    %c0 = arith.constant 0 : index
    %c0_0 = arith.constant 0 : index
    %0 = vector.load %arg1[%c0, %c0_0] : memref<16x896xbf16, #tpu.memory_space<vmem>>, vector<16x896xbf16>
    %c0_1 = arith.constant 0 : index
    %c0_2 = arith.constant 0 : index
    %1 = vector.load %arg2[%c0_1, %c0_2] : memref<896x512xbf16, #tpu.memory_space<vmem>>, vector<896x512xbf16>
    %cst = arith.constant dense<0.000000e+00> : vector<16x512xf32>
    %2 = tpu.matmul %0, %1, %cst {dimension_numbers = #tpu.dot_dimension_numbers<[1], [0], [0], [1], [0, 0, 1, 1], [], []>} : vector<16x896xbf16>, vector<896x512xbf16>, vector<16x512xf32> -> vector<16x512xf32>
    %c0_3 = arith.constant 0 : index
    %c0_4 = arith.constant 0 : index
    %3 = vector.load %arg3[%c0_3, %c0_4] : memref<1x512xf32, #tpu.memory_space<vmem>>, vector<1x512xf32>
    %4 = vector.broadcast %3 : vector<1x512xf32> to vector<16x512xf32>
    %5 = arith.addf %2, %4 : vector<16x512xf32>
    %cst_5 = arith.constant 0.000000e+00 : f32
    %6 = vector.broadcast %cst_5 : f32 to vector<16x512xf32>
    %7 = arith.maximumf %5, %6 : vector<16x512xf32>
    %8 = arith.truncf %7 : vector<16x512xf32> to vector<16x512xbf16>
    %c0_6 = arith.constant 0 : index
    %c0_7 = arith.constant 0 : index
    %9 = vector.load %arg4[%c0_6, %c0_7] : memref<512x128xbf16, #tpu.memory_space<vmem>>, vector<512x128xbf16>
    %cst_8 = arith.constant dense<0.000000e+00> : vector<16x128xf32>
    %10 = tpu.matmul %8, %9, %cst_8 {dimension_numbers = #tpu.dot_dimension_numbers<[1], [0], [0], [1], [0, 0, 1, 1], [], []>} : vector<16x512xbf16>, vector<512x128xbf16>, vector<16x128xf32> -> vector<16x128xf32>
    %c0_9 = arith.constant 0 : index
    %c0_10 = arith.constant 0 : index
    %11 = vector.load %arg5[%c0_9, %c0_10] : memref<1x128xf32, #tpu.memory_space<vmem>>, vector<1x128xf32>
    %12 = vector.broadcast %11 : vector<1x128xf32> to vector<16x128xf32>
    %13 = arith.addf %10, %12 : vector<16x128xf32>
    %c0_11 = arith.constant 0 : index
    %c0_12 = arith.constant 0 : index
    %14 = vector.load %arg6[%c0_11, %c0_12] : memref<16x128xf32, #tpu.memory_space<vmem>>, vector<16x128xf32>
    tpu.vector_store %arg6[%c0_11, %c0_12], %13 {strides = array<i32>} : memref<16x128xf32, #tpu.memory_space<vmem>>, vector<16x128xf32>,
    return
  }
  func.func @transform_0(%arg0: i32) -> (i32, i32) {
    %c0_i32 = arith.constant 0 : i32
    %c0_i32_0 = arith.constant 0 : i32
    return %arg0, %c0_i32 : i32, i32
  }
  func.func @transform_1(%arg0: i32) -> (i32, i32) {
    %c0_i32 = arith.constant 0 : i32
    %c0_i32_0 = arith.constant 0 : i32
    %c0_i32_1 = arith.constant 0 : i32
    return %c0_i32, %c0_i32_0 : i32, i32
  }
  func.func @transform_2(%arg0: i32) -> (i32, i32) {
    %c0_i32 = arith.constant 0 : i32
    %c0_i32_0 = arith.constant 0 : i32
    %c0_i32_1 = arith.constant 0 : i32
    return %c0_i32, %c0_i32_0 : i32, i32
  }
  func.func @transform_3(%arg0: i32) -> (i32, i32) {
    %c0_i32 = arith.constant 0 : i32
    %c0_i32_0 = arith.constant 0 : i32
    %c0_i32_1 = arith.constant 0 : i32
    return %c0_i32, %c0_i32_0 : i32, i32
  }
  func.func @transform_4(%arg0: i32) -> (i32, i32) {
    %c0_i32 = arith.constant 0 : i32
    %c0_i32_0 = arith.constant 0 : i32
    %c0_i32_1 = arith.constant 0 : i32
    return %c0_i32, %c0_i32_0 : i32, i32
  }
  func.func @transform_5(%arg0: i32) -> (i32, i32) {
    %c0_i32 = arith.constant 0 : i32
    %c0_i32_0 = arith.constant 0 : i32
    return %arg0, %c0_i32 : i32, i32
  }
}

</mosaic_0001>

<llo_original>
// kernel: tpu_custom_call.1
$region0: #{tpu_custom_call.1}
  #allocation0 [shape = 'u32[]', space=smem, size = 0x4, offset = 0x4, fixed_abs, tag = 'smem constant byte address 0x4 - core index']
  #allocation1 [shape = 'u32[72,128]{1,0:T(1,128)}', space=vmem, size = 0x9000, scoped, tag = 'internal scratch']
  %s0 = inlined_call_operand.hbm [shape: bf16[16,896], index: 0, kind: input, shape index: {}]
  %s1 = inlined_call_operand.hbm [shape: bf16[896,512], index: 1, kind: input, shape index: {}]
  %s2 = inlined_call_operand.hbm [shape: f32[1,512], index: 2, kind: input, shape index: {}]
  %s3 = inlined_call_operand.hbm [shape: bf16[512,128], index: 3, kind: input, shape index: {}]
  %s4 = inlined_call_operand.vmem [shape: f32[1,128], index: 4, kind: input, shape index: {}]
  %s5 = inlined_call_operand.hbm [shape: f32[16,128], index: 5, kind: output, shape index: {}]
  %s6 = sld [smem:[#allocation0]]
  $region46: #{tpu_custom_call.1} parent=0
    _
  %s8 = ssub.s32 1, %s6
  %s9 = scalar_select 0, %s8, %s6
  $region1: #{tpu_custom_call.1} parent=0
    #allocation2 [shape = 'u8[28672]{0}', space=vmem, size = 0x7000, scoped, tag = 'input window, operand 0, single buffered']
    #allocation3 [shape = 's32[1]{0}', space=sflag, size = 0x4, scoped, tag = 'scoped memory for tpu_custom_call.1']
    #allocation4 [shape = 's32[1]{0}', space=sflag, size = 0x4, scoped, tag = 'scoped memory for tpu_custom_call.1']
    #allocation5 [shape = 'u8[917504]{0}', space=vmem, size = 0xe0000, scoped, tag = 'input window, operand 1, single buffered']
    #allocation6 [shape = 's32[1]{0}', space=sflag, size = 0x4, scoped, tag = 'scoped memory for tpu_custom_call.1']
    #allocation7 [shape = 'u8[2048]{0}', space=vmem, size = 0x800, scoped, tag = 'input window, operand 2, single buffered']
    #allocation8 [shape = 'u8[131072]{0}', space=vmem, size = 0x20000, scoped, tag = 'input window, operand 3, single buffered']
    #allocation9 [shape = 's32[1]{0}', space=sflag, size = 0x4, scoped, tag = 'scoped memory for tpu_custom_call.1']
    #allocation10 [shape = 'u8[8192]{0}', space=vmem, size = 0x2000, scoped, tag = 'output window, operand 0, single buffered']
    %10 = vsyncpa [#allocation3], 0
    %11 = vsyncpa [#allocation6], 0
    %12 = vsyncpa [#allocation9], 0
    %13 = vsyncpa [#allocation4], 0
    // Predicated region
    $region2: #{tpu_custom_call.1} parent=1 // pred_check
      _
    $region3: #{tpu_custom_call.1} parent=1 // pred_check_branch
      %15 = sbr.rel (0) target = $region5
    $region4: #{tpu_custom_call.1} parent=1 // pred_region
      %17 = vsyncadd [#allocation3], 0
      %s18 = sshll.u32 %s0, 4
      %s19 = int_to_ptr.hbm [resolvable:$true] %s18
      %s20 = sshll.u32 [#allocation2], 4
      %s21 = int_to_ptr.vmem [resolvable:$true] %s20
      %26 = dma.hbm_to_vmem [thread:$0]  %s19, 896, %s21, [#allocation3], 448, 448, 28
    $region5: #{tpu_custom_call.1} parent=1 // pred_fallthru
      _
    // Predicated region
    $region6: #{tpu_custom_call.1} parent=1 // pred_check
      _
    $region7: #{tpu_custom_call.1} parent=1 // pred_check_branch
      %28 = sbr.rel (0) target = $region9
    $region8: #{tpu_custom_call.1} parent=1 // pred_region
      %30 = vsyncadd [#allocation6], 0
      %s31 = sshll.u32 %s1, 4
      %s32 = int_to_ptr.hbm [resolvable:$true] %s31
      %s33 = sshll.u32 [#allocation5], 4
      %s34 = int_to_ptr.vmem [resolvable:$true] %s33
      %39 = dma.hbm_to_vmem [thread:$0]  %s32, 28672, %s34, [#allocation6], 256, 256, 16
    $region9: #{tpu_custom_call.1} parent=1 // pred_fallthru
      _
    // Predicated region
    $region10: #{tpu_custom_call.1} parent=1 // pred_check
      _
    $region11: #{tpu_custom_call.1} parent=1 // pred_check_branch
      %41 = sbr.rel (0) target = $region13
    $region12: #{tpu_custom_call.1} parent=1 // pred_region
      %43 = vsyncadd [#allocation6], 0
      %s45 = sshll.u32 %s2, 4
      %s46 = int_to_ptr.hbm [resolvable:$true] %s45
      %s47 = sshll.u32 [#allocation7], 4
      %s48 = int_to_ptr.vmem [resolvable:$true] %s47
      %50 = dma.hbm_to_vmem [thread:$0]  %s46, 64, %s48, [#allocation6]
    $region13: #{tpu_custom_call.1} parent=1 // pred_fallthru
      _
    // Predicated region
    $region14: #{tpu_custom_call.1} parent=1 // pred_check
      _
    $region15: #{tpu_custom_call.1} parent=1 // pred_check_branch
      %52 = sbr.rel (0) target = $region17
    $region16: #{tpu_custom_call.1} parent=1 // pred_region
      %54 = vsyncadd [#allocation9], 0
      %s55 = sshll.u32 %s3, 4
      %s56 = int_to_ptr.hbm [resolvable:$true] %s55
      %s57 = sshll.u32 [#allocation8], 4
      %s58 = int_to_ptr.vmem [resolvable:$true] %s57
      %63 = dma.hbm_to_vmem [thread:$0]  %s56, 4096, %s58, [#allocation9], 64, 64, 4
    $region17: #{tpu_custom_call.1} parent=1 // pred_fallthru
      _
    // Predicated region
    $region18: #{tpu_custom_call.1} parent=1 // pred_check
      _
    $region19: #{tpu_custom_call.1} parent=1 // pred_check_branch
      %65 = sbr.rel (0) target = $region21
    $region20: #{tpu_custom_call.1} parent=1 // pred_region
      _
    $region21: #{tpu_custom_call.1} parent=1 // pred_fallthru
      _
    // Predicated region
    $region22: #{tpu_custom_call.1} parent=1 // pred_check
      _
    $region23: #{tpu_custom_call.1} parent=1 // pred_check_branch
      %67 = sbr.rel (0) target = $region25
    $region24: #{tpu_custom_call.1} parent=1 // pred_region
      %69 = dma.done [#allocation3], 896
    $region25: #{tpu_custom_call.1} parent=1 // pred_fallthru
      _
    // Predicated region
    $region26: #{tpu_custom_call.1} parent=1 // pred_check
      _
    $region27: #{tpu_custom_call.1} parent=1 // pred_check_branch
      %71 = sbr.rel (0) target = $region29
    $region28: #{tpu_custom_call.1} parent=1 // pred_region
      %73 = dma.done [#allocation6], 28672
    $region29: #{tpu_custom_call.1} parent=1 // pred_fallthru
      _
    // Predicated region
    $region30: #{tpu_custom_call.1} parent=1 // pred_check
      _
    $region31: #{tpu_custom_call.1} parent=1 // pred_check_branch
      %75 = sbr.rel (0) target = $region33
    $region32: #{tpu_custom_call.1} parent=1 // pred_region
      %77 = dma.done [#allocation6], 64
    $region33: #{tpu_custom_call.1} parent=1 // pred_fallthru
      _
    // Predicated region
    $region34: #{tpu_custom_call.1} parent=1 // pred_check
      _
    $region35: #{tpu_custom_call.1} parent=1 // pred_check_branch
      %79 = sbr.rel (0) target = $region37
    $region36: #{tpu_custom_call.1} parent=1 // pred_region
      %81 = dma.done [#allocation9], 4096
    $region37: #{tpu_custom_call.1} parent=1 // pred_fallthru
      _
    %v82 = vld [vmem:[#allocation2] sm:$0xff]
    %v83 = vld [vmem:[#allocation2 + $0x8] sm:$0xff]
    %v84 = vld [vmem:[#allocation2 + $0x10] sm:$0xff]
    %v85 = vld [vmem:[#allocation2 + $0x18] sm:$0xf]
    %v86 = vld [vmem:[#allocation2 + $0x1c] sm:$0xff]
    %v87 = vld [vmem:[#allocation2 + $0x24] sm:$0xff]
    %v88 = vld [vmem:[#allocation2 + $0x2c] sm:$0xff]
    %v89 = vld [vmem:[#allocation2 + $0x34] sm:$0xf]
    %v90 = vld [vmem:[#allocation5] sm:$0xff]
    %v91 = vld [vmem:[#allocation5 + $0x8] sm:$0xff]
    %v92 = vld [vmem:[#allocation5 + $0x10] sm:$0xff]
    %v93 = vld [vmem:[#allocation5 + $0x18] sm:$0xff]
    %v94 = vld [vmem:[#allocation5 + $0x20] sm:$0xff]
    %v95 = vld [vmem:[#allocation5 + $0x28] sm:$0xff]
    %v96 = vld [vmem:[#allocation5 + $0x30] sm:$0xff]
    %v97 = vld [vmem:[#allocation5 + $0x38] sm:$0xff]
    %v98 = vld [vmem:[#allocation5 + $0x40] sm:$0xff]
    %v99 = vld [vmem:[#allocation5 + $0x48] sm:$0xff]
    %v100 = vld [vmem:[#allocation5 + $0x50] sm:$0xff]
    %v101 = vld [vmem:[#allocation5 + $0x58] sm:$0xff]
    %v102 = vld [vmem:[#allocation5 + $0x60] sm:$0xff]
    %v103 = vld [vmem:[#allocation5 + $0x68] sm:$0xff]
    %v104 = vld [vmem:[#allocation5 + $0x70] sm:$0xff]
    %v105 = vld [vmem:[#allocation5 + $0x78] sm:$0xff]
    %v106 = vld [vmem:[#allocation5 + $0x80] sm:$0xff]
    %v107 = vld [vmem:[#allocation5 + $0x88] sm:$0xff]
    %v108 = vld [vmem:[#allocation5 + $0x90] sm:$0xff]
    %v109 = vld [vmem:[#allocation5 + $0x98] sm:$0xff]
    %v110 = vld [vmem:[#allocation5 + $0xa0] sm:$0xff]
    %v111 = vld [vmem:[#allocation5 + $0xa8] sm:$0xff]
    %v112 = vld [vmem:[#allocation5 + $0xb0] sm:$0xff]
    %v113 = vld [vmem:[#allocation5 + $0xb8] sm:$0xff]
    %v114 = vld [vmem:[#allocation5 + $0xc0] sm:$0xff]
    %v115 = vld [vmem:[#allocation5 + $0xc8] sm:$0xff]
    %v116 = vld [vmem:[#allocation5 + $0xd0] sm:$0xff]
    %v117 = vld [vmem:[#allocation5 + $0xd8] sm:$0xff]
    %v118 = vld [vmem:[#allocation5 + $0xe0] sm:$0xff]
    %v119 = vld [vmem:[#allocation5 + $0xe8] sm:$0xff]
    %v120 = vld [vmem:[#allocation5 + $0xf0] sm:$0xff]
    %v121 = vld [vmem:[#allocation5 + $0xf8] sm:$0xff]
    %v122 = vld [vmem:[#allocation5 + $0x100] sm:$0xff]
    %v123 = vld [vmem:[#allocation5 + $0x108] sm:$0xff]
    %v124 = vld [vmem:[#allocation5 + $0x110] sm:$0xff]
    %v125 = vld [vmem:[#allocation5 + $0x118] sm:$0xff]
    %v126 = vld [vmem:[#allocation5 + $0x120] sm:$0xff]
    %v127 = vld [vmem:[#allocation5 + $0x128] sm:$0xff]
    %v128 = vld [vmem:[#allocation5 + $0x130] sm:$0xff]
    %v129 = vld [vmem:[#allocation5 + $0x138] sm:$0xff]
    %v130 = vld [vmem:[#allocation5 + $0x140] sm:$0xff]
    %v131 = vld [vmem:[#allocation5 + $0x148] sm:$0xff]
    %v132 = vld [vmem:[#allocation5 + $0x150] sm:$0xff]
    %v133 = vld [vmem:[#allocation5 + $0x158] sm:$0xff]
    %v134 = vld [vmem:[#allocation5 + $0x160] sm:$0xff]
    %v135 = vld [vmem:[#allocation5 + $0x168] sm:$0xff]
    %v136 = vld [vmem:[#allocation5 + $0x170] sm:$0xff]
    %v137 = vld [vmem:[#allocation5 + $0x178] sm:$0xff]
    %v138 = vld [vmem:[#allocation5 + $0x180] sm:$0xff]
    %v139 = vld [vmem:[#allocation5 + $0x188] sm:$0xff]
    %v140 = vld [vmem:[#allocation5 + $0x190] sm:$0xff]
    %v141 = vld [vmem:[#allocation5 + $0x198] sm:$0xff]
    %v142 = vld [vmem:[#allocation5 + $0x1a0] sm:$0xff]
    %v143 = vld [vmem:[#allocation5 + $0x1a8] sm:$0xff]
    %v144 = vld [vmem:[#allocation5 + $0x1b0] sm:$0xff]
    %v145 = vld [vmem:[#allocation5 + $0x1b8] sm:$0xff]
    %v146 = vld [vmem:[#allocation5 + $0x1c0] sm:$0xff]
    %v147 = vld [vmem:[#allocation5 + $0x1c8] sm:$0xff]
    %v148 = vld [vmem:[#allocation5 + $0x1d0] sm:$0xff]
    %v149 = vld [vmem:[#allocation5 + $0x1d8] sm:$0xff]
    %v150 = vld [vmem:[#allocation5 + $0x1e0] sm:$0xff]
    %v151 = vld [vmem:[#allocation5 + $0x1e8] sm:$0xff]
    %v152 = vld [vmem:[#allocation5 + $0x1f0] sm:$0xff]
    %v153 = vld [vmem:[#allocation5 + $0x1f8] sm:$0xff]
    %v154 = vld [vmem:[#allocation5 + $0x200] sm:$0xff]
    %v155 = vld [vmem:[#allocation5 + $0x208] sm:$0xff]
    %v156 = vld [vmem:[#allocation5 + $0x210] sm:$0xff]
    %v157 = vld [vmem:[#allocation5 + $0x218] sm:$0xff]
    %v158 = vld [vmem:[#allocation5 + $0x220] sm:$0xff]
    %v159 = vld [vmem:[#allocation5 + $0x228] sm:$0xff]
    %v160 = vld [vmem:[#allocation5 + $0x230] sm:$0xff]
    %v161 = vld [vmem:[#allocation5 + $0x238] sm:$0xff]
    %v162 = vld [vmem:[#allocation5 + $0x240] sm:$0xff]
    %v163 = vld [vmem:[#allocation5 + $0x248] sm:$0xff]
    %v164 = vld [vmem:[#allocation5 + $0x250] sm:$0xff]
    %v165 = vld [vmem:[#allocation5 + $0x258] sm:$0xff]
    %v166 = vld [vmem:[#allocation5 + $0x260] sm:$0xff]
    %v167 = vld [vmem:[#allocation5 + $0x268] sm:$0xff]
    %v168 = vld [vmem:[#allocation5 + $0x270] sm:$0xff]
    %v169 = vld [vmem:[#allocation5 + $0x278] sm:$0xff]
    %v170 = vld [vmem:[#allocation5 + $0x280] sm:$0xff]
    %v171 = vld [vmem:[#allocation5 + $0x288] sm:$0xff]
    %v172 = vld [vmem:[#allocation5 + $0x290] sm:$0xff]
    %v173 = vld [vmem:[#allocation5 + $0x298] sm:$0xff]
    %v174 = vld [vmem:[#allocation5 + $0x2a0] sm:$0xff]
    %v175 = vld [vmem:[#allocation5 + $0x2a8] sm:$0xff]
    %v176 = vld [vmem:[#allocation5 + $0x2b0] sm:$0xff]
    %v177 = vld [vmem:[#allocation5 + $0x2b8] sm:$0xff]
    %v178 = vld [vmem:[#allocation5 + $0x2c0] sm:$0xff]
    %v179 = vld [vmem:[#allocation5 + $0x2c8] sm:$0xff]
    %v180 = vld [vmem:[#allocation5 + $0x2d0] sm:$0xff]
    %v181 = vld [vmem:[#allocation5 + $0x2d8] sm:$0xff]
    %v182 = vld [vmem:[#allocation5 + $0x2e0] sm:$0xff]
    %v183 = vld [vmem:[#allocation5 + $0x2e8] sm:$0xff]
    %v184 = vld [vmem:[#allocation5 + $0x2f0] sm:$0xff]
    %v185 = vld [vmem:[#allocation5 + $0x2f8] sm:$0xff]
    %v186 = vld [vmem:[#allocation5 + $0x300] sm:$0xff]
    %v187 = vld [vmem:[#allocation5 + $0x308] sm:$0xff]
    %v188 = vld [vmem:[#allocation5 + $0x310] sm:$0xff]
    %v189 = vld [vmem:[#allocation5 + $0x318] sm:$0xff]
    %v190 = vld [vmem:[#allocation5 + $0x320] sm:$0xff]
    %v191 = vld [vmem:[#allocation5 + $0x328] sm:$0xff]
    %v192 = vld [vmem:[#allocation5 + $0x330] sm:$0xff]
    %v193 = vld [vmem:[#allocation5 + $0x338] sm:$0xff]
    %v194 = vld [vmem:[#allocation5 + $0x340] sm:$0xff]
    %v195 = vld [vmem:[#allocation5 + $0x348] sm:$0xff]
    %v196 = vld [vmem:[#allocation5 + $0x350] sm:$0xff]
    %v197 = vld [vmem:[#allocation5 + $0x358] sm:$0xff]
    %v198 = vld [vmem:[#allocation5 + $0x360] sm:$0xff]
    %v199 = vld [vmem:[#allocation5 + $0x368] sm:$0xff]
    %v200 = vld [vmem:[#allocation5 + $0x370] sm:$0xff]
    %v201 = vld [vmem:[#allocation5 + $0x378] sm:$0xff]
    %v202 = vld [vmem:[#allocation5 + $0x380] sm:$0xff]
    %v203 = vld [vmem:[#allocation5 + $0x388] sm:$0xff]
    %v204 = vld [vmem:[#allocation5 + $0x390] sm:$0xff]
    %v205 = vld [vmem:[#allocation5 + $0x398] sm:$0xff]
    %v206 = vld [vmem:[#allocation5 + $0x3a0] sm:$0xff]
    %v207 = vld [vmem:[#allocation5 + $0x3a8] sm:$0xff]
    %v208 = vld [vmem:[#allocation5 + $0x3b0] sm:$0xff]
    %v209 = vld [vmem:[#allocation5 + $0x3b8] sm:$0xff]
    %v210 = vld [vmem:[#allocation5 + $0x3c0] sm:$0xff]
    %v211 = vld [vmem:[#allocation5 + $0x3c8] sm:$0xff]
    %v212 = vld [vmem:[#allocation5 + $0x3d0] sm:$0xff]
    %v213 = vld [vmem:[#allocation5 + $0x3d8] sm:$0xff]
    %v214 = vld [vmem:[#allocation5 + $0x3e0] sm:$0xff]
    %v215 = vld [vmem:[#allocation5 + $0x3e8] sm:$0xff]
    %v216 = vld [vmem:[#allocation5 + $0x3f0] sm:$0xff]
    %v217 = vld [vmem:[#allocation5 + $0x3f8] sm:$0xff]
    %v218 = vld [vmem:[#allocation5 + $0x400] sm:$0xff]
    %v219 = vld [vmem:[#allocation5 + $0x408] sm:$0xff]
    %v220 = vld [vmem:[#allocation5 + $0x410] sm:$0xff]
    %v221 = vld [vmem:[#allocation5 + $0x418] sm:$0xff]
    %v222 = vld [vmem:[#allocation5 + $0x420] sm:$0xff]
    %v223 = vld [vmem:[#allocation5 + $0x428] sm:$0xff]
    %v224 = vld [vmem:[#allocation5 + $0x430] sm:$0xff]
    %v225 = vld [vmem:[#allocation5 + $0x438] sm:$0xff]
    %v226 = vld [vmem:[#allocation5 + $0x440] sm:$0xff]
    %v227 = vld [vmem:[#allocation5 + $0x448] sm:$0xff]
    %v228 = vld [vmem:[#allocation5 + $0x450] sm:$0xff]
    %v229 = vld [vmem:[#allocation5 + $0x458] sm:$0xff]
    %v230 = vld [vmem:[#allocation5 + $0x460] sm:$0xff]
    %v231 = vld [vmem:[#allocation5 + $0x468] sm:$0xff]
    %v232 = vld [vmem:[#allocation5 + $0x470] sm:$0xff]
    %v233 = vld [vmem:[#allocation5 + $0x478] sm:$0xff]
    %v234 = vld [vmem:[#allocation5 + $0x480] sm:$0xff]
    %v235 = vld [vmem:[#allocation5 + $0x488] sm:$0xff]
    %v236 = vld [vmem:[#allocation5 + $0x490] sm:$0xff]
    %v237 = vld [vmem:[#allocation5 + $0x498] sm:$0xff]
    %v238 = vld [vmem:[#allocation5 + $0x4a0] sm:$0xff]
    %v239 = vld [vmem:[#allocation5 + $0x4a8] sm:$0xff]
    %v240 = vld [vmem:[#allocation5 + $0x4b0] sm:$0xff]
    %v241 = vld [vmem:[#allocation5 + $0x4b8] sm:$0xff]
    %v242 = vld [vmem:[#allocation5 + $0x4c0] sm:$0xff]
    %v243 = vld [vmem:[#allocation5 + $0x4c8] sm:$0xff]
    %v244 = vld [vmem:[#allocation5 + $0x4d0] sm:$0xff]
    %v245 = vld [vmem:[#allocation5 + $0x4d8] sm:$0xff]
    %v246 = vld [vmem:[#allocation5 + $0x4e0] sm:$0xff]
    %v247 = vld [vmem:[#allocation5 + $0x4e8] sm:$0xff]
    %v248 = vld [vmem:[#allocation5 + $0x4f0] sm:$0xff]
    %v249 = vld [vmem:[#allocation5 + $0x4f8] sm:$0xff]
    %v250 = vld [vmem:[#allocation5 + $0x500] sm:$0xff]
    %v251 = vld [vmem:[#allocation5 + $0x508] sm:$0xff]
    %v252 = vld [vmem:[#allocation5 + $0x510] sm:$0xff]
    %v253 = vld [vmem:[#allocation5 + $0x518] sm:$0xff]
    %v254 = vld [vmem:[#allocation5 + $0x520] sm:$0xff]
    %v255 = vld [vmem:[#allocation5 + $0x528] sm:$0xff]
    %v256 = vld [vmem:[#allocation5 + $0x530] sm:$0xff]
    %v257 = vld [vmem:[#allocation5 + $0x538] sm:$0xff]
    %v258 = vld [vmem:[#allocation5 + $0x540] sm:$0xff]
    %v259 = vld [vmem:[#allocation5 + $0x548] sm:$0xff]
    %v260 = vld [vmem:[#allocation5 + $0x550] sm:$0xff]
    %v261 = vld [vmem:[#allocation5 + $0x558] sm:$0xff]
    %v262 = vld [vmem:[#allocation5 + $0x560] sm:$0xff]
    %v263 = vld [vmem:[#allocation5 + $0x568] sm:$0xff]
    %v264 = vld [vmem:[#allocation5 + $0x570] sm:$0xff]
    %v265 = vld [vmem:[#allocation5 + $0x578] sm:$0xff]
    %v266 = vld [vmem:[#allocation5 + $0x580] sm:$0xff]
    %v267 = vld [vmem:[#allocation5 + $0x588] sm:$0xff]
    %v268 = vld [vmem:[#allocation5 + $0x590] sm:$0xff]
    %v269 = vld [vmem:[#allocation5 + $0x598] sm:$0xff]
    %v270 = vld [vmem:[#allocation5 + $0x5a0] sm:$0xff]
    %v271 = vld [vmem:[#allocation5 + $0x5a8] sm:$0xff]
    %v272 = vld [vmem:[#allocation5 + $0x5b0] sm:$0xff]
    %v273 = vld [vmem:[#allocation5 + $0x5b8] sm:$0xff]
    %v274 = vld [vmem:[#allocation5 + $0x5c0] sm:$0xff]
    %v275 = vld [vmem:[#allocation5 + $0x5c8] sm:$0xff]
    %v276 = vld [vmem:[#allocation5 + $0x5d0] sm:$0xff]
    %v277 = vld [vmem:[#allocation5 + $0x5d8] sm:$0xff]
    %v278 = vld [vmem:[#allocation5 + $0x5e0] sm:$0xff]
    %v279 = vld [vmem:[#allocation5 + $0x5e8] sm:$0xff]
    %v280 = vld [vmem:[#allocation5 + $0x5f0] sm:$0xff]
    %v281 = vld [vmem:[#allocation5 + $0x5f8] sm:$0xff]
    %v282 = vld [vmem:[#allocation5 + $0x600] sm:$0xff]
    %v283 = vld [vmem:[#allocation5 + $0x608] sm:$0xff]
    %v284 = vld [vmem:[#allocation5 + $0x610] sm:$0xff]
    %v285 = vld [vmem:[#allocation5 + $0x618] sm:$0xff]
    %v286 = vld [vmem:[#allocation5 + $0x620] sm:$0xff]
    %v287 = vld [vmem:[#allocation5 + $0x628] sm:$0xff]
    %v288 = vld [vmem:[#allocation5 + $0x630] sm:$0xff]
    %v289 = vld [vmem:[#allocation5 + $0x638] sm:$0xff]
    %v290 = vld [vmem:[#allocation5 + $0x640] sm:$0xff]
    %v291 = vld [vmem:[#allocation5 + $0x648] sm:$0xff]
    %v292 = vld [vmem:[#allocation5 + $0x650] sm:$0xff]
    %v293 = vld [vmem:[#allocation5 + $0x658] sm:$0xff]
    %v294 = vld [vmem:[#allocation5 + $0x660] sm:$0xff]
    %v295 = vld [vmem:[#allocation5 + $0x668] sm:$0xff]
    %v296 = vld [vmem:[#allocation5 + $0x670] sm:$0xff]
    %v297 = vld [vmem:[#allocation5 + $0x678] sm:$0xff]
    %v298 = vld [vmem:[#allocation5 + $0x680] sm:$0xff]
    %v299 = vld [vmem:[#allocation5 + $0x688] sm:$0xff]
    %v300 = vld [vmem:[#allocation5 + $0x690] sm:$0xff]
    %v301 = vld [vmem:[#allocation5 + $0x698] sm:$0xff]
    %v302 = vld [vmem:[#allocation5 + $0x6a0] sm:$0xff]
    %v303 = vld [vmem:[#allocation5 + $0x6a8] sm:$0xff]
    %v304 = vld [vmem:[#allocation5 + $0x6b0] sm:$0xff]
    %v305 = vld [vmem:[#allocation5 + $0x6b8] sm:$0xff]
    %v306 = vld [vmem:[#allocation5 + $0x6c0] sm:$0xff]
    %v307 = vld [vmem:[#allocation5 + $0x6c8] sm:$0xff]
    %v308 = vld [vmem:[#allocation5 + $0x6d0] sm:$0xff]
    %v309 = vld [vmem:[#allocation5 + $0x6d8] sm:$0xff]
    %v310 = vld [vmem:[#allocation5 + $0x6e0] sm:$0xff]
    %v311 = vld [vmem:[#allocation5 + $0x6e8] sm:$0xff]
    %v312 = vld [vmem:[#allocation5 + $0x6f0] sm:$0xff]
    %v313 = vld [vmem:[#allocation5 + $0x6f8] sm:$0xff]
    %v314 = vld [vmem:[#allocation7] sm:$0xf]
    %v316 = vperm.slane %v314, 0
    %v317 = vperm.slane %v314, 1
    %v318 = vperm.slane %v314, 2
    %v319 = vperm.slane %v314, 3
    %v332 = vunpack.c.l.b16 %v82
    %v333 = vunpack.c.h.b16 %v82
    %v334 = vunpack.c.l.b16 %v83
    %v335 = vunpack.c.h.b16 %v83
    %v336 = vunpack.c.l.b16 %v84
    %v337 = vunpack.c.h.b16 %v84
    %v338 = vunpack.c.l.b16 %v85
    %v339 = vunpack.c.l.b16 %v86
    %v340 = vunpack.c.h.b16 %v86
    %v341 = vunpack.c.l.b16 %v87
    %v342 = vunpack.c.h.b16 %v87
    %v343 = vunpack.c.l.b16 %v88
    %v344 = vunpack.c.h.b16 %v88
    %v345 = vunpack.c.l.b16 %v89
    %v346 = vpack.c.b16 %v339, %v332
    %v347 = vpack.c.b16 %v340, %v333
    %v348 = vpack.c.b16 %v341, %v334
    %v349 = vpack.c.b16 %v342, %v335
    %v350 = vpack.c.b16 %v343, %v336
    %v351 = vpack.c.b16 %v344, %v337
    %v352 = vpack.c.b16 %v345, %v338
    %v584 = vunpack.c.l.b16 %v90
    %v585 = vunpack.c.h.b16 %v90
    %v586 = vunpack.c.l.b16 %v91
    %v587 = vunpack.c.h.b16 %v91
    %v588 = vunpack.c.l.b16 %v92
    %v589 = vunpack.c.h.b16 %v92
    %v590 = vunpack.c.l.b16 %v93
    %v591 = vunpack.c.h.b16 %v93
    %v592 = vunpack.c.l.b16 %v94
    %v593 = vunpack.c.h.b16 %v94
    %v594 = vunpack.c.l.b16 %v95
    %v595 = vunpack.c.h.b16 %v95
    %v596 = vunpack.c.l.b16 %v96
    %v597 = vunpack.c.h.b16 %v96
    %v598 = vunpack.c.l.b16 %v97
    %v599 = vunpack.c.h.b16 %v97
    %v600 = vunpack.c.l.b16 %v98
    %v601 = vunpack.c.h.b16 %v98
    %v602 = vunpack.c.l.b16 %v99
    %v603 = vunpack.c.h.b16 %v99
    %v604 = vunpack.c.l.b16 %v100
    %v605 = vunpack.c.h.b16 %v100
    %v606 = vunpack.c.l.b16 %v101
    %v607 = vunpack.c.h.b16 %v101
    %v608 = vunpack.c.l.b16 %v102
    %v609 = vunpack.c.h.b16 %v102
    %v610 = vunpack.c.l.b16 %v103
    %v611 = vunpack.c.h.b16 %v103
    %v612 = vunpack.c.l.b16 %v104
    %v613 = vunpack.c.h.b16 %v104
    %v614 = vunpack.c.l.b16 %v105
    %v615 = vunpack.c.h.b16 %v105
    %v616 = vunpack.c.l.b16 %v106
    %v617 = vunpack.c.h.b16 %v106
    %v618 = vunpack.c.l.b16 %v107
    %v619 = vunpack.c.h.b16 %v107
    %v620 = vunpack.c.l.b16 %v108
    %v621 = vunpack.c.h.b16 %v108
    %v622 = vunpack.c.l.b16 %v109
    %v623 = vunpack.c.h.b16 %v109
    %v624 = vunpack.c.l.b16 %v110
    %v625 = vunpack.c.h.b16 %v110
    %v626 = vunpack.c.l.b16 %v111
    %v627 = vunpack.c.h.b16 %v111
    %v628 = vunpack.c.l.b16 %v112
    %v629 = vunpack.c.h.b16 %v112
    %v630 = vunpack.c.l.b16 %v113
    %v631 = vunpack.c.h.b16 %v113
    %v632 = vunpack.c.l.b16 %v114
    %v633 = vunpack.c.h.b16 %v114
    %v634 = vunpack.c.l.b16 %v115
    %v635 = vunpack.c.h.b16 %v115
    %v636 = vunpack.c.l.b16 %v116
    %v637 = vunpack.c.h.b16 %v116
    %v638 = vunpack.c.l.b16 %v117
    %v639 = vunpack.c.h.b16 %v117
    %v640 = vunpack.c.l.b16 %v118
    %v641 = vunpack.c.h.b16 %v118
    %v642 = vunpack.c.l.b16 %v119
    %v643 = vunpack.c.h.b16 %v119
    %v644 = vunpack.c.l.b16 %v120
    %v645 = vunpack.c.h.b16 %v120
    %v646 = vunpack.c.l.b16 %v121
    %v647 = vunpack.c.h.b16 %v121
    %v648 = vunpack.c.l.b16 %v122
    %v649 = vunpack.c.h.b16 %v122
    %v650 = vunpack.c.l.b16 %v123
    %v651 = vunpack.c.h.b16 %v123
    %v652 = vunpack.c.l.b16 %v124
    %v653 = vunpack.c.h.b16 %v124
    %v654 = vunpack.c.l.b16 %v125
    %v655 = vunpack.c.h.b16 %v125
    %v656 = vunpack.c.l.b16 %v126
    %v657 = vunpack.c.h.b16 %v126
    %v658 = vunpack.c.l.b16 %v127
    %v659 = vunpack.c.h.b16 %v127
    %v660 = vunpack.c.l.b16 %v128
    %v661 = vunpack.c.h.b16 %v128
    %v662 = vunpack.c.l.b16 %v129
    %v663 = vunpack.c.h.b16 %v129
    %v664 = vunpack.c.l.b16 %v130
    %v665 = vunpack.c.h.b16 %v130
    %v666 = vunpack.c.l.b16 %v131
    %v667 = vunpack.c.h.b16 %v131
    %v668 = vunpack.c.l.b16 %v132
    %v669 = vunpack.c.h.b16 %v132
    %v670 = vunpack.c.l.b16 %v133
    %v671 = vunpack.c.h.b16 %v133
    %v672 = vunpack.c.l.b16 %v134
    %v673 = vunpack.c.h.b16 %v134
    %v674 = vunpack.c.l.b16 %v135
    %v675 = vunpack.c.h.b16 %v135
    %v676 = vunpack.c.l.b16 %v136
    %v677 = vunpack.c.h.b16 %v136
    %v678 = vunpack.c.l.b16 %v137
    %v679 = vunpack.c.h.b16 %v137
    %v680 = vunpack.c.l.b16 %v138
    %v681 = vunpack.c.h.b16 %v138
    %v682 = vunpack.c.l.b16 %v139
    %v683 = vunpack.c.h.b16 %v139
    %v684 = vunpack.c.l.b16 %v140
    %v685 = vunpack.c.h.b16 %v140
    %v686 = vunpack.c.l.b16 %v141
    %v687 = vunpack.c.h.b16 %v141
    %v688 = vunpack.c.l.b16 %v142
    %v689 = vunpack.c.h.b16 %v142
    %v690 = vunpack.c.l.b16 %v143
    %v691 = vunpack.c.h.b16 %v143
    %v692 = vunpack.c.l.b16 %v144
    %v693 = vunpack.c.h.b16 %v144
    %v694 = vunpack.c.l.b16 %v145
    %v695 = vunpack.c.h.b16 %v145
    %v696 = vunpack.c.l.b16 %v146
    %v697 = vunpack.c.h.b16 %v146
    %v698 = vunpack.c.l.b16 %v147
    %v699 = vunpack.c.h.b16 %v147
    %v700 = vunpack.c.l.b16 %v148
    %v701 = vunpack.c.h.b16 %v148
    %v702 = vunpack.c.l.b16 %v149
    %v703 = vunpack.c.h.b16 %v149
    %v704 = vunpack.c.l.b16 %v150
    %v705 = vunpack.c.h.b16 %v150
    %v706 = vunpack.c.l.b16 %v151
    %v707 = vunpack.c.h.b16 %v151
    %v708 = vunpack.c.l.b16 %v152
    %v709 = vunpack.c.h.b16 %v152
    %v710 = vunpack.c.l.b16 %v153
    %v711 = vunpack.c.h.b16 %v153
    %v712 = vunpack.c.l.b16 %v154
    %v713 = vunpack.c.h.b16 %v154
    %v714 = vunpack.c.l.b16 %v155
    %v715 = vunpack.c.h.b16 %v155
    %v716 = vunpack.c.l.b16 %v156
    %v717 = vunpack.c.h.b16 %v156
    %v718 = vunpack.c.l.b16 %v157
    %v719 = vunpack.c.h.b16 %v157
    %v720 = vunpack.c.l.b16 %v158
    %v721 = vunpack.c.h.b16 %v158
    %v722 = vunpack.c.l.b16 %v159
    %v723 = vunpack.c.h.b16 %v159
    %v724 = vunpack.c.l.b16 %v160
    %v725 = vunpack.c.h.b16 %v160
    %v726 = vunpack.c.l.b16 %v161
    %v727 = vunpack.c.h.b16 %v161
    %v728 = vunpack.c.l.b16 %v162
    %v729 = vunpack.c.h.b16 %v162
    %v730 = vunpack.c.l.b16 %v163
    %v731 = vunpack.c.h.b16 %v163
    %v732 = vunpack.c.l.b16 %v164
    %v733 = vunpack.c.h.b16 %v164
    %v734 = vunpack.c.l.b16 %v165
    %v735 = vunpack.c.h.b16 %v165
    %v736 = vunpack.c.l.b16 %v166
    %v737 = vunpack.c.h.b16 %v166
    %v738 = vunpack.c.l.b16 %v167
    %v739 = vunpack.c.h.b16 %v167
    %v740 = vunpack.c.l.b16 %v168
    %v741 = vunpack.c.h.b16 %v168
    %v742 = vunpack.c.l.b16 %v169
    %v743 = vunpack.c.h.b16 %v169
    %v744 = vunpack.c.l.b16 %v170
    %v745 = vunpack.c.h.b16 %v170
    %v746 = vunpack.c.l.b16 %v171
    %v747 = vunpack.c.h.b16 %v171
    %v748 = vunpack.c.l.b16 %v172
    %v749 = vunpack.c.h.b16 %v172
    %v750 = vunpack.c.l.b16 %v173
    %v751 = vunpack.c.h.b16 %v173
    %v752 = vunpack.c.l.b16 %v174
    %v753 = vunpack.c.h.b16 %v174
    %v754 = vunpack.c.l.b16 %v175
    %v755 = vunpack.c.h.b16 %v175
    %v756 = vunpack.c.l.b16 %v176
    %v757 = vunpack.c.h.b16 %v176
    %v758 = vunpack.c.l.b16 %v177
    %v759 = vunpack.c.h.b16 %v177
    %v760 = vunpack.c.l.b16 %v178
    %v761 = vunpack.c.h.b16 %v178
    %v762 = vunpack.c.l.b16 %v179
    %v763 = vunpack.c.h.b16 %v179
    %v764 = vunpack.c.l.b16 %v180
    %v765 = vunpack.c.h.b16 %v180
    %v766 = vunpack.c.l.b16 %v181
    %v767 = vunpack.c.h.b16 %v181
    %v768 = vunpack.c.l.b16 %v182
    %v769 = vunpack.c.h.b16 %v182
    %v770 = vunpack.c.l.b16 %v183
    %v771 = vunpack.c.h.b16 %v183
    %v772 = vunpack.c.l.b16 %v184
    %v773 = vunpack.c.h.b16 %v184
    %v774 = vunpack.c.l.b16 %v185
    %v775 = vunpack.c.h.b16 %v185
    %v776 = vunpack.c.l.b16 %v186
    %v777 = vunpack.c.h.b16 %v186
    %v778 = vunpack.c.l.b16 %v187
    %v779 = vunpack.c.h.b16 %v187
    %v780 = vunpack.c.l.b16 %v188
    %v781 = vunpack.c.h.b16 %v188
    %v782 = vunpack.c.l.b16 %v189
    %v783 = vunpack.c.h.b16 %v189
    %v784 = vunpack.c.l.b16 %v190
    %v785 = vunpack.c.h.b16 %v190
    %v786 = vunpack.c.l.b16 %v191
    %v787 = vunpack.c.h.b16 %v191
    %v788 = vunpack.c.l.b16 %v192
    %v789 = vunpack.c.h.b16 %v192
    %v790 = vunpack.c.l.b16 %v193
    %v791 = vunpack.c.h.b16 %v193
    %v792 = vunpack.c.l.b16 %v194
    %v793 = vunpack.c.h.b16 %v194
    %v794 = vunpack.c.l.b16 %v195
    %v795 = vunpack.c.h.b16 %v195
    %v796 = vunpack.c.l.b16 %v196
    %v797 = vunpack.c.h.b16 %v196
    %v798 = vunpack.c.l.b16 %v197
    %v799 = vunpack.c.h.b16 %v197
    %v800 = vunpack.c.l.b16 %v198
    %v801 = vunpack.c.h.b16 %v198
    %v802 = vunpack.c.l.b16 %v199
    %v803 = vunpack.c.h.b16 %v199
    %v804 = vunpack.c.l.b16 %v200
    %v805 = vunpack.c.h.b16 %v200
    %v806 = vunpack.c.l.b16 %v201
    %v807 = vunpack.c.h.b16 %v201
    %v808 = vunpack.c.l.b16 %v202
    %v809 = vunpack.c.h.b16 %v202
    %v810 = vunpack.c.l.b16 %v203
    %v811 = vunpack.c.h.b16 %v203
    %v812 = vunpack.c.l.b16 %v204
    %v813 = vunpack.c.h.b16 %v204
    %v814 = vunpack.c.l.b16 %v205
    %v815 = vunpack.c.h.b16 %v205
    %v816 = vunpack.c.l.b16 %v206
    %v817 = vunpack.c.h.b16 %v206
    %v818 = vunpack.c.l.b16 %v207
    %v819 = vunpack.c.h.b16 %v207
    %v820 = vunpack.c.l.b16 %v208
    %v821 = vunpack.c.h.b16 %v208
    %v822 = vunpack.c.l.b16 %v209
    %v823 = vunpack.c.h.b16 %v209
    %v824 = vunpack.c.l.b16 %v210
    %v825 = vunpack.c.h.b16 %v210
    %v826 = vunpack.c.l.b16 %v211
    %v827 = vunpack.c.h.b16 %v211
    %v828 = vunpack.c.l.b16 %v212
    %v829 = vunpack.c.h.b16 %v212
    %v830 = vunpack.c.l.b16 %v213
    %v831 = vunpack.c.h.b16 %v213
    %v832 = vunpack.c.l.b16 %v214
    %v833 = vunpack.c.h.b16 %v214
    %v834 = vunpack.c.l.b16 %v215
    %v835 = vunpack.c.h.b16 %v215
    %v836 = vunpack.c.l.b16 %v216
    %v837 = vunpack.c.h.b16 %v216
    %v838 = vunpack.c.l.b16 %v217
    %v839 = vunpack.c.h.b16 %v217
    %v840 = vunpack.c.l.b16 %v218
    %v841 = vunpack.c.h.b16 %v218
    %v842 = vunpack.c.l.b16 %v219
    %v843 = vunpack.c.h.b16 %v219
    %v844 = vunpack.c.l.b16 %v220
    %v845 = vunpack.c.h.b16 %v220
    %v846 = vunpack.c.l.b16 %v221
    %v847 = vunpack.c.h.b16 %v221
    %v848 = vunpack.c.l.b16 %v222
    %v849 = vunpack.c.h.b16 %v222
    %v850 = vunpack.c.l.b16 %v223
    %v851 = vunpack.c.h.b16 %v223
    %v852 = vunpack.c.l.b16 %v224
    %v853 = vunpack.c.h.b16 %v224
    %v854 = vunpack.c.l.b16 %v225
    %v855 = vunpack.c.h.b16 %v225
    %v856 = vunpack.c.l.b16 %v226
    %v857 = vunpack.c.h.b16 %v226
    %v858 = vunpack.c.l.b16 %v227
    %v859 = vunpack.c.h.b16 %v227
    %v860 = vunpack.c.l.b16 %v228
    %v861 = vunpack.c.h.b16 %v228
    %v862 = vunpack.c.l.b16 %v229
    %v863 = vunpack.c.h.b16 %v229
    %v864 = vunpack.c.l.b16 %v230
    %v865 = vunpack.c.h.b16 %v230
    %v866 = vunpack.c.l.b16 %v231
    %v867 = vunpack.c.h.b16 %v231
    %v868 = vunpack.c.l.b16 %v232
    %v869 = vunpack.c.h.b16 %v232
    %v870 = vunpack.c.l.b16 %v233
    %v871 = vunpack.c.h.b16 %v233
    %v872 = vunpack.c.l.b16 %v234
    %v873 = vunpack.c.h.b16 %v234
    %v874 = vunpack.c.l.b16 %v235
    %v875 = vunpack.c.h.b16 %v235
    %v876 = vunpack.c.l.b16 %v236
    %v877 = vunpack.c.h.b16 %v236
    %v878 = vunpack.c.l.b16 %v237
    %v879 = vunpack.c.h.b16 %v237
    %v880 = vunpack.c.l.b16 %v238
    %v881 = vunpack.c.h.b16 %v238
    %v882 = vunpack.c.l.b16 %v239
    %v883 = vunpack.c.h.b16 %v239
    %v884 = vunpack.c.l.b16 %v240
    %v885 = vunpack.c.h.b16 %v240
    %v886 = vunpack.c.l.b16 %v241
    %v887 = vunpack.c.h.b16 %v241
    %v888 = vunpack.c.l.b16 %v242
    %v889 = vunpack.c.h.b16 %v242
    %v890 = vunpack.c.l.b16 %v243
    %v891 = vunpack.c.h.b16 %v243
    %v892 = vunpack.c.l.b16 %v244
    %v893 = vunpack.c.h.b16 %v244
    %v894 = vunpack.c.l.b16 %v245
    %v895 = vunpack.c.h.b16 %v245
    %v896 = vunpack.c.l.b16 %v246
    %v897 = vunpack.c.h.b16 %v246
    %v898 = vunpack.c.l.b16 %v247
    %v899 = vunpack.c.h.b16 %v247
    %v900 = vunpack.c.l.b16 %v248
    %v901 = vunpack.c.h.b16 %v248
    %v902 = vunpack.c.l.b16 %v249
    %v903 = vunpack.c.h.b16 %v249
    %v904 = vunpack.c.l.b16 %v250
    %v905 = vunpack.c.h.b16 %v250
    %v906 = vunpack.c.l.b16 %v251
    %v907 = vunpack.c.h.b16 %v251
    %v908 = vunpack.c.l.b16 %v252
    %v909 = vunpack.c.h.b16 %v252
    %v910 = vunpack.c.l.b16 %v253
    %v911 = vunpack.c.h.b16 %v253
    %v912 = vunpack.c.l.b16 %v254
    %v913 = vunpack.c.h.b16 %v254
    %v914 = vunpack.c.l.b16 %v255
    %v915 = vunpack.c.h.b16 %v255
    %v916 = vunpack.c.l.b16 %v256
    %v917 = vunpack.c.h.b16 %v256
    %v918 = vunpack.c.l.b16 %v257
    %v919 = vunpack.c.h.b16 %v257
    %v920 = vunpack.c.l.b16 %v258
    %v921 = vunpack.c.h.b16 %v258
    %v922 = vunpack.c.l.b16 %v259
    %v923 = vunpack.c.h.b16 %v259
    %v924 = vunpack.c.l.b16 %v260
    %v925 = vunpack.c.h.b16 %v260
    %v926 = vunpack.c.l.b16 %v261
    %v927 = vunpack.c.h.b16 %v261
    %v928 = vunpack.c.l.b16 %v262
    %v929 = vunpack.c.h.b16 %v262
    %v930 = vunpack.c.l.b16 %v263
    %v931 = vunpack.c.h.b16 %v263
    %v932 = vunpack.c.l.b16 %v264
    %v933 = vunpack.c.h.b16 %v264
    %v934 = vunpack.c.l.b16 %v265
    %v935 = vunpack.c.h.b16 %v265
    %v936 = vunpack.c.l.b16 %v266
    %v937 = vunpack.c.h.b16 %v266
    %v938 = vunpack.c.l.b16 %v267
    %v939 = vunpack.c.h.b16 %v267
    %v940 = vunpack.c.l.b16 %v268
    %v941 = vunpack.c.h.b16 %v268
    %v942 = vunpack.c.l.b16 %v269
    %v943 = vunpack.c.h.b16 %v269
    %v944 = vunpack.c.l.b16 %v270
    %v945 = vunpack.c.h.b16 %v270
    %v946 = vunpack.c.l.b16 %v271
    %v947 = vunpack.c.h.b16 %v271
    %v948 = vunpack.c.l.b16 %v272
    %v949 = vunpack.c.h.b16 %v272
    %v950 = vunpack.c.l.b16 %v273
    %v951 = vunpack.c.h.b16 %v273
    %v952 = vunpack.c.l.b16 %v274
    %v953 = vunpack.c.h.b16 %v274
    %v954 = vunpack.c.l.b16 %v275
    %v955 = vunpack.c.h.b16 %v275
    %v956 = vunpack.c.l.b16 %v276
    %v957 = vunpack.c.h.b16 %v276
    %v958 = vunpack.c.l.b16 %v277
    %v959 = vunpack.c.h.b16 %v277
    %v960 = vunpack.c.l.b16 %v278
    %v961 = vunpack.c.h.b16 %v278
    %v962 = vunpack.c.l.b16 %v279
    %v963 = vunpack.c.h.b16 %v279
    %v964 = vunpack.c.l.b16 %v280
    %v965 = vunpack.c.h.b16 %v280
    %v966 = vunpack.c.l.b16 %v281
    %v967 = vunpack.c.h.b16 %v281
    %v968 = vunpack.c.l.b16 %v282
    %v969 = vunpack.c.h.b16 %v282
    %v970 = vunpack.c.l.b16 %v283
    %v971 = vunpack.c.h.b16 %v283
    %v972 = vunpack.c.l.b16 %v284
    %v973 = vunpack.c.h.b16 %v284
    %v974 = vunpack.c.l.b16 %v285
    %v975 = vunpack.c.h.b16 %v285
    %v976 = vunpack.c.l.b16 %v286
    %v977 = vunpack.c.h.b16 %v286
    %v978 = vunpack.c.l.b16 %v287
    %v979 = vunpack.c.h.b16 %v287
    %v980 = vunpack.c.l.b16 %v288
    %v981 = vunpack.c.h.b16 %v288
    %v982 = vunpack.c.l.b16 %v289
    %v983 = vunpack.c.h.b16 %v289
    %v984 = vunpack.c.l.b16 %v290
    %v985 = vunpack.c.h.b16 %v290
    %v986 = vunpack.c.l.b16 %v291
    %v987 = vunpack.c.h.b16 %v291
    %v988 = vunpack.c.l.b16 %v292
    %v989 = vunpack.c.h.b16 %v292
    %v990 = vunpack.c.l.b16 %v293
    %v991 = vunpack.c.h.b16 %v293
    %v992 = vunpack.c.l.b16 %v294
    %v993 = vunpack.c.h.b16 %v294
    %v994 = vunpack.c.l.b16 %v295
    %v995 = vunpack.c.h.b16 %v295
    %v996 = vunpack.c.l.b16 %v296
    %v997 = vunpack.c.h.b16 %v296
    %v998 = vunpack.c.l.b16 %v297
    %v999 = vunpack.c.h.b16 %v297
    %v1000 = vunpack.c.l.b16 %v298
    %v1001 = vunpack.c.h.b16 %v298
    %v1002 = vunpack.c.l.b16 %v299
    %v1003 = vunpack.c.h.b16 %v299
    %v1004 = vunpack.c.l.b16 %v300
    %v1005 = vunpack.c.h.b16 %v300
    %v1006 = vunpack.c.l.b16 %v301
    %v1007 = vunpack.c.h.b16 %v301
    %v1008 = vunpack.c.l.b16 %v302
    %v1009 = vunpack.c.h.b16 %v302
    %v1010 = vunpack.c.l.b16 %v303
    %v1011 = vunpack.c.h.b16 %v303
    %v1012 = vunpack.c.l.b16 %v304
    %v1013 = vunpack.c.h.b16 %v304
    %v1014 = vunpack.c.l.b16 %v305
    %v1015 = vunpack.c.h.b16 %v305
    %v1016 = vunpack.c.l.b16 %v306
    %v1017 = vunpack.c.h.b16 %v306
    %v1018 = vunpack.c.l.b16 %v307
    %v1019 = vunpack.c.h.b16 %v307
    %v1020 = vunpack.c.l.b16 %v308
    %v1021 = vunpack.c.h.b16 %v308
    %v1022 = vunpack.c.l.b16 %v309
    %v1023 = vunpack.c.h.b16 %v309
    %v1024 = vunpack.c.l.b16 %v310
    %v1025 = vunpack.c.h.b16 %v310
    %v1026 = vunpack.c.l.b16 %v311
    %v1027 = vunpack.c.h.b16 %v311
    %v1028 = vunpack.c.l.b16 %v312
    %v1029 = vunpack.c.h.b16 %v312
    %v1030 = vunpack.c.l.b16 %v313
    %v1031 = vunpack.c.h.b16 %v313
    %v1032 = vpack.c.b16 %v588, %v584
    %v1033 = vpack.c.b16 %v589, %v585
    %v1034 = vpack.c.b16 %v590, %v586
    %v1035 = vpack.c.b16 %v591, %v587
    %v1036 = vpack.c.b16 %v596, %v592
    %v1037 = vpack.c.b16 %v597, %v593
    %v1038 = vpack.c.b16 %v598, %v594
    %v1039 = vpack.c.b16 %v599, %v595
    %v1040 = vpack.c.b16 %v604, %v600
    %v1041 = vpack.c.b16 %v605, %v601
    %v1042 = vpack.c.b16 %v606, %v602
    %v1043 = vpack.c.b16 %v607, %v603
    %v1044 = vpack.c.b16 %v612, %v608
    %v1045 = vpack.c.b16 %v613, %v609
    %v1046 = vpack.c.b16 %v614, %v610
    %v1047 = vpack.c.b16 %v615, %v611
    %v1048 = vpack.c.b16 %v620, %v616
    %v1049 = vpack.c.b16 %v621, %v617
    %v1050 = vpack.c.b16 %v622, %v618
    %v1051 = vpack.c.b16 %v623, %v619
    %v1052 = vpack.c.b16 %v628, %v624
    %v1053 = vpack.c.b16 %v629, %v625
    %v1054 = vpack.c.b16 %v630, %v626
    %v1055 = vpack.c.b16 %v631, %v627
    %v1056 = vpack.c.b16 %v636, %v632
    %v1057 = vpack.c.b16 %v637, %v633
    %v1058 = vpack.c.b16 %v638, %v634
    %v1059 = vpack.c.b16 %v639, %v635
    %v1060 = vpack.c.b16 %v644, %v640
    %v1061 = vpack.c.b16 %v645, %v641
    %v1062 = vpack.c.b16 %v646, %v642
    %v1063 = vpack.c.b16 %v647, %v643
    %v1064 = vpack.c.b16 %v652, %v648
    %v1065 = vpack.c.b16 %v653, %v649
    %v1066 = vpack.c.b16 %v654, %v650
    %v1067 = vpack.c.b16 %v655, %v651
    %v1068 = vpack.c.b16 %v660, %v656
    %v1069 = vpack.c.b16 %v661, %v657
    %v1070 = vpack.c.b16 %v662, %v658
    %v1071 = vpack.c.b16 %v663, %v659
    %v1072 = vpack.c.b16 %v668, %v664
    %v1073 = vpack.c.b16 %v669, %v665
    %v1074 = vpack.c.b16 %v670, %v666
    %v1075 = vpack.c.b16 %v671, %v667
    %v1076 = vpack.c.b16 %v676, %v672
    %v1077 = vpack.c.b16 %v677, %v673
    %v1078 = vpack.c.b16 %v678, %v674
    %v1079 = vpack.c.b16 %v679, %v675
    %v1080 = vpack.c.b16 %v684, %v680
    %v1081 = vpack.c.b16 %v685, %v681
    %v1082 = vpack.c.b16 %v686, %v682
    %v1083 = vpack.c.b16 %v687, %v683
    %v1084 = vpack.c.b16 %v692, %v688
    %v1085 = vpack.c.b16 %v693, %v689
    %v1086 = vpack.c.b16 %v694, %v690
    %v1087 = vpack.c.b16 %v695, %v691
    %v1088 = vpack.c.b16 %v700, %v696
    %v1089 = vpack.c.b16 %v701, %v697
    %v1090 = vpack.c.b16 %v702, %v698
    %v1091 = vpack.c.b16 %v703, %v699
    %v1092 = vpack.c.b16 %v708, %v704
    %v1093 = vpack.c.b16 %v709, %v705
    %v1094 = vpack.c.b16 %v710, %v706
    %v1095 = vpack.c.b16 %v711, %v707
    %v1096 = vpack.c.b16 %v716, %v712
    %v1097 = vpack.c.b16 %v717, %v713
    %v1098 = vpack.c.b16 %v718, %v714
    %v1099 = vpack.c.b16 %v719, %v715
    %v1100 = vpack.c.b16 %v724, %v720
    %v1101 = vpack.c.b16 %v725, %v721
    %v1102 = vpack.c.b16 %v726, %v722
    %v1103 = vpack.c.b16 %v727, %v723
    %v1104 = vpack.c.b16 %v732, %v728
    %v1105 = vpack.c.b16 %v733, %v729
    %v1106 = vpack.c.b16 %v734, %v730
    %v1107 = vpack.c.b16 %v735, %v731
    %v1108 = vpack.c.b16 %v740, %v736
    %v1109 = vpack.c.b16 %v741, %v737
    %v1110 = vpack.c.b16 %v742, %v738
    %v1111 = vpack.c.b16 %v743, %v739
    %v1112 = vpack.c.b16 %v748, %v744
    %v1113 = vpack.c.b16 %v749, %v745
    %v1114 = vpack.c.b16 %v750, %v746
    %v1115 = vpack.c.b16 %v751, %v747
    %v1116 = vpack.c.b16 %v756, %v752
    %v1117 = vpack.c.b16 %v757, %v753
    %v1118 = vpack.c.b16 %v758, %v754
    %v1119 = vpack.c.b16 %v759, %v755
    %v1120 = vpack.c.b16 %v764, %v760
    %v1121 = vpack.c.b16 %v765, %v761
    %v1122 = vpack.c.b16 %v766, %v762
    %v1123 = vpack.c.b16 %v767, %v763
    %v1124 = vpack.c.b16 %v772, %v768
    %v1125 = vpack.c.b16 %v773, %v769
    %v1126 = vpack.c.b16 %v774, %v770
    %v1127 = vpack.c.b16 %v775, %v771
    %v1128 = vpack.c.b16 %v780, %v776
    %v1129 = vpack.c.b16 %v781, %v777
    %v1130 = vpack.c.b16 %v782, %v778
    %v1131 = vpack.c.b16 %v783, %v779
    %v1132 = vpack.c.b16 %v788, %v784
    %v1133 = vpack.c.b16 %v789, %v785
    %v1134 = vpack.c.b16 %v790, %v786
    %v1135 = vpack.c.b16 %v791, %v787
    %v1136 = vpack.c.b16 %v796, %v792
    %v1137 = vpack.c.b16 %v797, %v793
    %v1138 = vpack.c.b16 %v798, %v794
    %v1139 = vpack.c.b16 %v799, %v795
    %v1140 = vpack.c.b16 %v804, %v800
    %v1141 = vpack.c.b16 %v805, %v801
    %v1142 = vpack.c.b16 %v806, %v802
    %v1143 = vpack.c.b16 %v807, %v803
    %v1144 = vpack.c.b16 %v812, %v808
    %v1145 = vpack.c.b16 %v813, %v809
    %v1146 = vpack.c.b16 %v814, %v810
    %v1147 = vpack.c.b16 %v815, %v811
    %v1148 = vpack.c.b16 %v820, %v816
    %v1149 = vpack.c.b16 %v821, %v817
    %v1150 = vpack.c.b16 %v822, %v818
    %v1151 = vpack.c.b16 %v823, %v819
    %v1152 = vpack.c.b16 %v828, %v824
    %v1153 = vpack.c.b16 %v829, %v825
    %v1154 = vpack.c.b16 %v830, %v826
    %v1155 = vpack.c.b16 %v831, %v827
    %v1156 = vpack.c.b16 %v836, %v832
    %v1157 = vpack.c.b16 %v837, %v833
    %v1158 = vpack.c.b16 %v838, %v834
    %v1159 = vpack.c.b16 %v839, %v835
    %v1160 = vpack.c.b16 %v844, %v840
    %v1161 = vpack.c.b16 %v845, %v841
    %v1162 = vpack.c.b16 %v846, %v842
    %v1163 = vpack.c.b16 %v847, %v843
    %v1164 = vpack.c.b16 %v852, %v848
    %v1165 = vpack.c.b16 %v853, %v849
    %v1166 = vpack.c.b16 %v854, %v850
    %v1167 = vpack.c.b16 %v855, %v851
    %v1168 = vpack.c.b16 %v860, %v856
    %v1169 = vpack.c.b16 %v861, %v857
    %v1170 = vpack.c.b16 %v862, %v858
    %v1171 = vpack.c.b16 %v863, %v859
    %v1172 = vpack.c.b16 %v868, %v864
    %v1173 = vpack.c.b16 %v869, %v865
    %v1174 = vpack.c.b16 %v870, %v866
    %v1175 = vpack.c.b16 %v871, %v867
    %v1176 = vpack.c.b16 %v876, %v872
    %v1177 = vpack.c.b16 %v877, %v873
    %v1178 = vpack.c.b16 %v878, %v874
    %v1179 = vpack.c.b16 %v879, %v875
    %v1180 = vpack.c.b16 %v884, %v880
    %v1181 = vpack.c.b16 %v885, %v881
    %v1182 = vpack.c.b16 %v886, %v882
    %v1183 = vpack.c.b16 %v887, %v883
    %v1184 = vpack.c.b16 %v892, %v888
    %v1185 = vpack.c.b16 %v893, %v889
    %v1186 = vpack.c.b16 %v894, %v890
    %v1187 = vpack.c.b16 %v895, %v891
    %v1188 = vpack.c.b16 %v900, %v896
    %v1189 = vpack.c.b16 %v901, %v897
    %v1190 = vpack.c.b16 %v902, %v898
    %v1191 = vpack.c.b16 %v903, %v899
    %v1192 = vpack.c.b16 %v908, %v904
    %v1193 = vpack.c.b16 %v909, %v905
    %v1194 = vpack.c.b16 %v910, %v906
    %v1195 = vpack.c.b16 %v911, %v907
    %v1196 = vpack.c.b16 %v916, %v912
    %v1197 = vpack.c.b16 %v917, %v913
    %v1198 = vpack.c.b16 %v918, %v914
    %v1199 = vpack.c.b16 %v919, %v915
    %v1200 = vpack.c.b16 %v924, %v920
    %v1201 = vpack.c.b16 %v925, %v921
    %v1202 = vpack.c.b16 %v926, %v922
    %v1203 = vpack.c.b16 %v927, %v923
    %v1204 = vpack.c.b16 %v932, %v928
    %v1205 = vpack.c.b16 %v933, %v929
    %v1206 = vpack.c.b16 %v934, %v930
    %v1207 = vpack.c.b16 %v935, %v931
    %v1208 = vpack.c.b16 %v940, %v936
    %v1209 = vpack.c.b16 %v941, %v937
    %v1210 = vpack.c.b16 %v942, %v938
    %v1211 = vpack.c.b16 %v943, %v939
    %v1212 = vpack.c.b16 %v948, %v944
    %v1213 = vpack.c.b16 %v949, %v945
    %v1214 = vpack.c.b16 %v950, %v946
    %v1215 = vpack.c.b16 %v951, %v947
    %v1216 = vpack.c.b16 %v956, %v952
    %v1217 = vpack.c.b16 %v957, %v953
    %v1218 = vpack.c.b16 %v958, %v954
    %v1219 = vpack.c.b16 %v959, %v955
    %v1220 = vpack.c.b16 %v964, %v960
    %v1221 = vpack.c.b16 %v965, %v961
    %v1222 = vpack.c.b16 %v966, %v962
    %v1223 = vpack.c.b16 %v967, %v963
    %v1224 = vpack.c.b16 %v972, %v968
    %v1225 = vpack.c.b16 %v973, %v969
    %v1226 = vpack.c.b16 %v974, %v970
    %v1227 = vpack.c.b16 %v975, %v971
    %v1228 = vpack.c.b16 %v980, %v976
    %v1229 = vpack.c.b16 %v981, %v977
    %v1230 = vpack.c.b16 %v982, %v978
    %v1231 = vpack.c.b16 %v983, %v979
    %v1232 = vpack.c.b16 %v988, %v984
    %v1233 = vpack.c.b16 %v989, %v985
    %v1234 = vpack.c.b16 %v990, %v986
    %v1235 = vpack.c.b16 %v991, %v987
    %v1236 = vpack.c.b16 %v996, %v992
    %v1237 = vpack.c.b16 %v997, %v993
    %v1238 = vpack.c.b16 %v998, %v994
    %v1239 = vpack.c.b16 %v999, %v995
    %v1240 = vpack.c.b16 %v1004, %v1000
    %v1241 = vpack.c.b16 %v1005, %v1001
    %v1242 = vpack.c.b16 %v1006, %v1002
    %v1243 = vpack.c.b16 %v1007, %v1003
    %v1244 = vpack.c.b16 %v1012, %v1008
    %v1245 = vpack.c.b16 %v1013, %v1009
    %v1246 = vpack.c.b16 %v1014, %v1010
    %v1247 = vpack.c.b16 %v1015, %v1011
    %v1248 = vpack.c.b16 %v1020, %v1016
    %v1249 = vpack.c.b16 %v1021, %v1017
    %v1250 = vpack.c.b16 %v1022, %v1018
    %v1251 = vpack.c.b16 %v1023, %v1019
    %v1252 = vpack.c.b16 %v1028, %v1024
    %v1253 = vpack.c.b16 %v1029, %v1025
    %v1254 = vpack.c.b16 %v1030, %v1026
    %v1255 = vpack.c.b16 %v1031, %v1027
    %1480 = vmatpush.bf16.msra.mxu0 %v1060
    %1481 = vmatpush.bf16.msra.mxu0 %v1056
    %1482 = vmatpush.bf16.msra.mxu0 %v1052
    %1483 = vmatpush.bf16.msra.mxu0 %v1048
    %1484 = vmatpush.bf16.msra.mxu0 %v1044
    %1485 = vmatpush.bf16.msra.mxu0 %v1040
    %1486 = vmatpush.bf16.msra.mxu0 %v1036
    %1487 = vmatpush.bf16.msra.mxu0 %v1032
    %1488 = vmatmul.bf16.gmra.mxu0 %v346
    %v1489 = vpop.f32.mrf.mxu0
    %v1490 = vadd.f32 %v316, %v1489
    %v1491 = vpop.f32.mrf.mxu0
    %v1492 = vadd.f32 %v316, %v1491
    %1493 = vdwg.mxu0
    %1494 = vmatpush.bf16.msra.mxu0 %v1092
    %1495 = vmatpush.bf16.msra.mxu0 %v1088
    %1496 = vmatpush.bf16.msra.mxu0 %v1084
    %1497 = vmatpush.bf16.msra.mxu0 %v1080
    %1498 = vmatpush.bf16.msra.mxu0 %v1076
    %1499 = vmatpush.bf16.msra.mxu0 %v1072
    %1500 = vmatpush.bf16.msra.mxu0 %v1068
    %1501 = vmatpush.bf16.msra.mxu0 %v1064
    %1502 = vmatmul.bf16.gmra.mxu0 %v347
    %v1503 = vpop.f32.mrf.mxu0
    %v1504 = vadd.f32 %v1490, %v1503
    %v1505 = vpop.f32.mrf.mxu0
    %v1506 = vadd.f32 %v1492, %v1505
    %1507 = vdwg.mxu0
    %1508 = vmatpush.bf16.msra.mxu0 %v1124
    %1509 = vmatpush.bf16.msra.mxu0 %v1120
    %1510 = vmatpush.bf16.msra.mxu0 %v1116
    %1511 = vmatpush.bf16.msra.mxu0 %v1112
    %1512 = vmatpush.bf16.msra.mxu0 %v1108
    %1513 = vmatpush.bf16.msra.mxu0 %v1104
    %1514 = vmatpush.bf16.msra.mxu0 %v1100
    %1515 = vmatpush.bf16.msra.mxu0 %v1096
    %1516 = vmatmul.bf16.gmra.mxu0 %v348
    %v1517 = vpop.f32.mrf.mxu0
    %v1518 = vadd.f32 %v1504, %v1517
    %v1519 = vpop.f32.mrf.mxu0
    %v1520 = vadd.f32 %v1506, %v1519
    %1521 = vdwg.mxu0
    %1522 = vmatpush.bf16.msra.mxu0 %v1156
    %1523 = vmatpush.bf16.msra.mxu0 %v1152
    %1524 = vmatpush.bf16.msra.mxu0 %v1148
    %1525 = vmatpush.bf16.msra.mxu0 %v1144
    %1526 = vmatpush.bf16.msra.mxu0 %v1140
    %1527 = vmatpush.bf16.msra.mxu0 %v1136
    %1528 = vmatpush.bf16.msra.mxu0 %v1132
    %1529 = vmatpush.bf16.msra.mxu0 %v1128
    %1530 = vmatmul.bf16.gmra.mxu0 %v349
    %v1531 = vpop.f32.mrf.mxu0
    %v1532 = vadd.f32 %v1518, %v1531
    %v1533 = vpop.f32.mrf.mxu0
    %v1534 = vadd.f32 %v1520, %v1533
    %1535 = vdwg.mxu0
    %1536 = vmatpush.bf16.msra.mxu0 %v1188
    %1537 = vmatpush.bf16.msra.mxu0 %v1184
    %1538 = vmatpush.bf16.msra.mxu0 %v1180
    %1539 = vmatpush.bf16.msra.mxu0 %v1176
    %1540 = vmatpush.bf16.msra.mxu0 %v1172
    %1541 = vmatpush.bf16.msra.mxu0 %v1168
    %1542 = vmatpush.bf16.msra.mxu0 %v1164
    %1543 = vmatpush.bf16.msra.mxu0 %v1160
    %1544 = vmatmul.bf16.gmra.mxu0 %v350
    %v1545 = vpop.f32.mrf.mxu0
    %v1546 = vadd.f32 %v1532, %v1545
    %v1547 = vpop.f32.mrf.mxu0
    %v1548 = vadd.f32 %v1534, %v1547
    %1549 = vdwg.mxu0
    %1550 = vmatpush.bf16.msra.mxu0 %v1220
    %1551 = vmatpush.bf16.msra.mxu0 %v1216
    %1552 = vmatpush.bf16.msra.mxu0 %v1212
    %1553 = vmatpush.bf16.msra.mxu0 %v1208
    %1554 = vmatpush.bf16.msra.mxu0 %v1204
    %1555 = vmatpush.bf16.msra.mxu0 %v1200
    %1556 = vmatpush.bf16.msra.mxu0 %v1196
    %1557 = vmatpush.bf16.msra.mxu0 %v1192
    %1558 = vmatmul.bf16.gmra.mxu0 %v351
    %v1559 = vpop.f32.mrf.mxu0
    %v1560 = vadd.f32 %v1546, %v1559
    %v1561 = vpop.f32.mrf.mxu0
    %v1562 = vadd.f32 %v1548, %v1561
    %1563 = vdwg.mxu0
    %1564 = vmatpush.bf16.msra.mxu0 %v1252
    %1565 = vmatpush.bf16.msra.mxu0 %v1248
    %1566 = vmatpush.bf16.msra.mxu0 %v1244
    %1567 = vmatpush.bf16.msra.mxu0 %v1240
    %1568 = vmatpush.bf16.msra.mxu0 %v1236
    %1569 = vmatpush.bf16.msra.mxu0 %v1232
    %1570 = vmatpush.bf16.msra.mxu0 %v1228
    %1571 = vmatpush.bf16.msra.mxu0 %v1224
    %1572 = vmatmul.bf16.gmra.mxu0 %v352
    %v1573 = vpop.f32.mrf.mxu0
    %v1574 = vadd.f32 %v1560, %v1573
    %v1575 = vpop.f32.mrf.mxu0
    %v1576 = vadd.f32 %v1562, %v1575
    %1577 = vdwg.mxu0
    %1578 = vmatpush.bf16.msra.mxu0 %v1061
    %1579 = vmatpush.bf16.msra.mxu0 %v1057
    %1580 = vmatpush.bf16.msra.mxu0 %v1053
    %1581 = vmatpush.bf16.msra.mxu0 %v1049
    %1582 = vmatpush.bf16.msra.mxu0 %v1045
    %1583 = vmatpush.bf16.msra.mxu0 %v1041
    %1584 = vmatpush.bf16.msra.mxu0 %v1037
    %1585 = vmatpush.bf16.msra.mxu0 %v1033
    %1586 = vmatmul.bf16.gmra.mxu0 %v346
    %v1587 = vpop.f32.mrf.mxu0
    %v1588 = vadd.f32 %v317, %v1587
    %v1589 = vpop.f32.mrf.mxu0
    %v1590 = vadd.f32 %v317, %v1589
    %1591 = vdwg.mxu0
    %1592 = vmatpush.bf16.msra.mxu0 %v1093
    %1593 = vmatpush.bf16.msra.mxu0 %v1089
    %1594 = vmatpush.bf16.msra.mxu0 %v1085
    %1595 = vmatpush.bf16.msra.mxu0 %v1081
    %1596 = vmatpush.bf16.msra.mxu0 %v1077
    %1597 = vmatpush.bf16.msra.mxu0 %v1073
    %1598 = vmatpush.bf16.msra.mxu0 %v1069
    %1599 = vmatpush.bf16.msra.mxu0 %v1065
    %1600 = vmatmul.bf16.gmra.mxu0 %v347
    %v1601 = vpop.f32.mrf.mxu0
    %v1602 = vadd.f32 %v1588, %v1601
    %v1603 = vpop.f32.mrf.mxu0
    %v1604 = vadd.f32 %v1590, %v1603
    %1605 = vdwg.mxu0
    %1606 = vmatpush.bf16.msra.mxu0 %v1125
    %1607 = vmatpush.bf16.msra.mxu0 %v1121
    %1608 = vmatpush.bf16.msra.mxu0 %v1117
    %1609 = vmatpush.bf16.msra.mxu0 %v1113
    %1610 = vmatpush.bf16.msra.mxu0 %v1109
    %1611 = vmatpush.bf16.msra.mxu0 %v1105
    %1612 = vmatpush.bf16.msra.mxu0 %v1101
    %1613 = vmatpush.bf16.msra.mxu0 %v1097
    %1614 = vmatmul.bf16.gmra.mxu0 %v348
    %v1615 = vpop.f32.mrf.mxu0
    %v1616 = vadd.f32 %v1602, %v1615
    %v1617 = vpop.f32.mrf.mxu0
    %v1618 = vadd.f32 %v1604, %v1617
    %1619 = vdwg.mxu0
    %1620 = vmatpush.bf16.msra.mxu0 %v1157
    %1621 = vmatpush.bf16.msra.mxu0 %v1153
    %1622 = vmatpush.bf16.msra.mxu0 %v1149
    %1623 = vmatpush.bf16.msra.mxu0 %v1145
    %1624 = vmatpush.bf16.msra.mxu0 %v1141
    %1625 = vmatpush.bf16.msra.mxu0 %v1137
    %1626 = vmatpush.bf16.msra.mxu0 %v1133
    %1627 = vmatpush.bf16.msra.mxu0 %v1129
    %1628 = vmatmul.bf16.gmra.mxu0 %v349
    %v1629 = vpop.f32.mrf.mxu0
    %v1630 = vadd.f32 %v1616, %v1629
    %v1631 = vpop.f32.mrf.mxu0
    %v1632 = vadd.f32 %v1618, %v1631
    %1633 = vdwg.mxu0
    %1634 = vmatpush.bf16.msra.mxu0 %v1189
    %1635 = vmatpush.bf16.msra.mxu0 %v1185
    %1636 = vmatpush.bf16.msra.mxu0 %v1181
    %1637 = vmatpush.bf16.msra.mxu0 %v1177
    %1638 = vmatpush.bf16.msra.mxu0 %v1173
    %1639 = vmatpush.bf16.msra.mxu0 %v1169
    %1640 = vmatpush.bf16.msra.mxu0 %v1165
    %1641 = vmatpush.bf16.msra.mxu0 %v1161
    %1642 = vmatmul.bf16.gmra.mxu0 %v350
    %v1643 = vpop.f32.mrf.mxu0
    %v1644 = vadd.f32 %v1630, %v1643
    %v1645 = vpop.f32.mrf.mxu0
    %v1646 = vadd.f32 %v1632, %v1645
    %1647 = vdwg.mxu0
    %1648 = vmatpush.bf16.msra.mxu0 %v1221
    %1649 = vmatpush.bf16.msra.mxu0 %v1217
    %1650 = vmatpush.bf16.msra.mxu0 %v1213
    %1651 = vmatpush.bf16.msra.mxu0 %v1209
    %1652 = vmatpush.bf16.msra.mxu0 %v1205
    %1653 = vmatpush.bf16.msra.mxu0 %v1201
    %1654 = vmatpush.bf16.msra.mxu0 %v1197
    %1655 = vmatpush.bf16.msra.mxu0 %v1193
    %1656 = vmatmul.bf16.gmra.mxu0 %v351
    %v1657 = vpop.f32.mrf.mxu0
    %v1658 = vadd.f32 %v1644, %v1657
    %v1659 = vpop.f32.mrf.mxu0
    %v1660 = vadd.f32 %v1646, %v1659
    %1661 = vdwg.mxu0
    %1662 = vmatpush.bf16.msra.mxu0 %v1253
    %1663 = vmatpush.bf16.msra.mxu0 %v1249
    %1664 = vmatpush.bf16.msra.mxu0 %v1245
    %1665 = vmatpush.bf16.msra.mxu0 %v1241
    %1666 = vmatpush.bf16.msra.mxu0 %v1237
    %1667 = vmatpush.bf16.msra.mxu0 %v1233
    %1668 = vmatpush.bf16.msra.mxu0 %v1229
    %1669 = vmatpush.bf16.msra.mxu0 %v1225
    %1670 = vmatmul.bf16.gmra.mxu0 %v352
    %v1671 = vpop.f32.mrf.mxu0
    %v1672 = vadd.f32 %v1658, %v1671
    %v1673 = vpop.f32.mrf.mxu0
    %v1674 = vadd.f32 %v1660, %v1673
    %1675 = vdwg.mxu0
    %1676 = vmatpush.bf16.msra.mxu0 %v1062
    %1677 = vmatpush.bf16.msra.mxu0 %v1058
    %1678 = vmatpush.bf16.msra.mxu0 %v1054
    %1679 = vmatpush.bf16.msra.mxu0 %v1050
    %1680 = vmatpush.bf16.msra.mxu0 %v1046
    %1681 = vmatpush.bf16.msra.mxu0 %v1042
    %1682 = vmatpush.bf16.msra.mxu0 %v1038
    %1683 = vmatpush.bf16.msra.mxu0 %v1034
    %1684 = vmatmul.bf16.gmra.mxu0 %v346
    %v1685 = vpop.f32.mrf.mxu0
    %v1686 = vadd.f32 %v318, %v1685
    %v1687 = vpop.f32.mrf.mxu0
    %v1688 = vadd.f32 %v318, %v1687
    %1689 = vdwg.mxu0
    %1690 = vmatpush.bf16.msra.mxu0 %v1094
    %1691 = vmatpush.bf16.msra.mxu0 %v1090
    %1692 = vmatpush.bf16.msra.mxu0 %v1086
    %1693 = vmatpush.bf16.msra.mxu0 %v1082
    %1694 = vmatpush.bf16.msra.mxu0 %v1078
    %1695 = vmatpush.bf16.msra.mxu0 %v1074
    %1696 = vmatpush.bf16.msra.mxu0 %v1070
    %1697 = vmatpush.bf16.msra.mxu0 %v1066
    %1698 = vmatmul.bf16.gmra.mxu0 %v347
    %v1699 = vpop.f32.mrf.mxu0
    %v1700 = vadd.f32 %v1686, %v1699
    %v1701 = vpop.f32.mrf.mxu0
    %v1702 = vadd.f32 %v1688, %v1701
    %1703 = vdwg.mxu0
    %1704 = vmatpush.bf16.msra.mxu0 %v1126
    %1705 = vmatpush.bf16.msra.mxu0 %v1122
    %1706 = vmatpush.bf16.msra.mxu0 %v1118
    %1707 = vmatpush.bf16.msra.mxu0 %v1114
    %1708 = vmatpush.bf16.msra.mxu0 %v1110
    %1709 = vmatpush.bf16.msra.mxu0 %v1106
    %1710 = vmatpush.bf16.msra.mxu0 %v1102
    %1711 = vmatpush.bf16.msra.mxu0 %v1098
    %1712 = vmatmul.bf16.gmra.mxu0 %v348
    %v1713 = vpop.f32.mrf.mxu0
    %v1714 = vadd.f32 %v1700, %v1713
    %v1715 = vpop.f32.mrf.mxu0
    %v1716 = vadd.f32 %v1702, %v1715
    %1717 = vdwg.mxu0
    %1718 = vmatpush.bf16.msra.mxu0 %v1158
    %1719 = vmatpush.bf16.msra.mxu0 %v1154
    %1720 = vmatpush.bf16.msra.mxu0 %v1150
    %1721 = vmatpush.bf16.msra.mxu0 %v1146
    %1722 = vmatpush.bf16.msra.mxu0 %v1142
    %1723 = vmatpush.bf16.msra.mxu0 %v1138
    %1724 = vmatpush.bf16.msra.mxu0 %v1134
    %1725 = vmatpush.bf16.msra.mxu0 %v1130
    %1726 = vmatmul.bf16.gmra.mxu0 %v349
    %v1727 = vpop.f32.mrf.mxu0
    %v1728 = vadd.f32 %v1714, %v1727
    %v1729 = vpop.f32.mrf.mxu0
    %v1730 = vadd.f32 %v1716, %v1729
    %1731 = vdwg.mxu0
    %1732 = vmatpush.bf16.msra.mxu0 %v1190
    %1733 = vmatpush.bf16.msra.mxu0 %v1186
    %1734 = vmatpush.bf16.msra.mxu0 %v1182
    %1735 = vmatpush.bf16.msra.mxu0 %v1178
    %1736 = vmatpush.bf16.msra.mxu0 %v1174
    %1737 = vmatpush.bf16.msra.mxu0 %v1170
    %1738 = vmatpush.bf16.msra.mxu0 %v1166
    %1739 = vmatpush.bf16.msra.mxu0 %v1162
    %1740 = vmatmul.bf16.gmra.mxu0 %v350
    %v1741 = vpop.f32.mrf.mxu0
    %v1742 = vadd.f32 %v1728, %v1741
    %v1743 = vpop.f32.mrf.mxu0
    %v1744 = vadd.f32 %v1730, %v1743
    %1745 = vdwg.mxu0
    %1746 = vmatpush.bf16.msra.mxu0 %v1222
    %1747 = vmatpush.bf16.msra.mxu0 %v1218
    %1748 = vmatpush.bf16.msra.mxu0 %v1214
    %1749 = vmatpush.bf16.msra.mxu0 %v1210
    %1750 = vmatpush.bf16.msra.mxu0 %v1206
    %1751 = vmatpush.bf16.msra.mxu0 %v1202
    %1752 = vmatpush.bf16.msra.mxu0 %v1198
    %1753 = vmatpush.bf16.msra.mxu0 %v1194
    %1754 = vmatmul.bf16.gmra.mxu0 %v351
    %v1755 = vpop.f32.mrf.mxu0
    %v1756 = vadd.f32 %v1742, %v1755
    %v1757 = vpop.f32.mrf.mxu0
    %v1758 = vadd.f32 %v1744, %v1757
    %1759 = vdwg.mxu0
    %1760 = vmatpush.bf16.msra.mxu0 %v1254
    %1761 = vmatpush.bf16.msra.mxu0 %v1250
    %1762 = vmatpush.bf16.msra.mxu0 %v1246
    %1763 = vmatpush.bf16.msra.mxu0 %v1242
    %1764 = vmatpush.bf16.msra.mxu0 %v1238
    %1765 = vmatpush.bf16.msra.mxu0 %v1234
    %1766 = vmatpush.bf16.msra.mxu0 %v1230
    %1767 = vmatpush.bf16.msra.mxu0 %v1226
    %1768 = vmatmul.bf16.gmra.mxu0 %v352
    %v1769 = vpop.f32.mrf.mxu0
    %v1770 = vadd.f32 %v1756, %v1769
    %v1771 = vpop.f32.mrf.mxu0
    %v1772 = vadd.f32 %v1758, %v1771
    %1773 = vdwg.mxu0
    %1774 = vmatpush.bf16.msra.mxu0 %v1063
    %1775 = vmatpush.bf16.msra.mxu0 %v1059
    %1776 = vmatpush.bf16.msra.mxu0 %v1055
    %1777 = vmatpush.bf16.msra.mxu0 %v1051
    %1778 = vmatpush.bf16.msra.mxu0 %v1047
    %1779 = vmatpush.bf16.msra.mxu0 %v1043
    %1780 = vmatpush.bf16.msra.mxu0 %v1039
    %1781 = vmatpush.bf16.msra.mxu0 %v1035
    %1782 = vmatmul.bf16.gmra.mxu0 %v346
    %v1783 = vpop.f32.mrf.mxu0
    %v1784 = vadd.f32 %v319, %v1783
    %v1785 = vpop.f32.mrf.mxu0
    %v1786 = vadd.f32 %v319, %v1785
    %1787 = vdwg.mxu0
    %1788 = vmatpush.bf16.msra.mxu0 %v1095
    %1789 = vmatpush.bf16.msra.mxu0 %v1091
    %1790 = vmatpush.bf16.msra.mxu0 %v1087
    %1791 = vmatpush.bf16.msra.mxu0 %v1083
    %1792 = vmatpush.bf16.msra.mxu0 %v1079
    %1793 = vmatpush.bf16.msra.mxu0 %v1075
    %1794 = vmatpush.bf16.msra.mxu0 %v1071
    %1795 = vmatpush.bf16.msra.mxu0 %v1067
    %1796 = vmatmul.bf16.gmra.mxu0 %v347
    %v1797 = vpop.f32.mrf.mxu0
    %v1798 = vadd.f32 %v1784, %v1797
    %v1799 = vpop.f32.mrf.mxu0
    %v1800 = vadd.f32 %v1786, %v1799
    %1801 = vdwg.mxu0
    %1802 = vmatpush.bf16.msra.mxu0 %v1127
    %1803 = vmatpush.bf16.msra.mxu0 %v1123
    %1804 = vmatpush.bf16.msra.mxu0 %v1119
    %1805 = vmatpush.bf16.msra.mxu0 %v1115
    %1806 = vmatpush.bf16.msra.mxu0 %v1111
    %1807 = vmatpush.bf16.msra.mxu0 %v1107
    %1808 = vmatpush.bf16.msra.mxu0 %v1103
    %1809 = vmatpush.bf16.msra.mxu0 %v1099
    %1810 = vmatmul.bf16.gmra.mxu0 %v348
    %v1811 = vpop.f32.mrf.mxu0
    %v1812 = vadd.f32 %v1798, %v1811
    %v1813 = vpop.f32.mrf.mxu0
    %v1814 = vadd.f32 %v1800, %v1813
    %1815 = vdwg.mxu0
    %1816 = vmatpush.bf16.msra.mxu0 %v1159
    %1817 = vmatpush.bf16.msra.mxu0 %v1155
    %1818 = vmatpush.bf16.msra.mxu0 %v1151
    %1819 = vmatpush.bf16.msra.mxu0 %v1147
    %1820 = vmatpush.bf16.msra.mxu0 %v1143
    %1821 = vmatpush.bf16.msra.mxu0 %v1139
    %1822 = vmatpush.bf16.msra.mxu0 %v1135
    %1823 = vmatpush.bf16.msra.mxu0 %v1131
    %1824 = vmatmul.bf16.gmra.mxu0 %v349
    %v1825 = vpop.f32.mrf.mxu0
    %v1826 = vadd.f32 %v1812, %v1825
    %v1827 = vpop.f32.mrf.mxu0
    %v1828 = vadd.f32 %v1814, %v1827
    %1829 = vdwg.mxu0
    %1830 = vmatpush.bf16.msra.mxu0 %v1191
    %1831 = vmatpush.bf16.msra.mxu0 %v1187
    %1832 = vmatpush.bf16.msra.mxu0 %v1183
    %1833 = vmatpush.bf16.msra.mxu0 %v1179
    %1834 = vmatpush.bf16.msra.mxu0 %v1175
    %1835 = vmatpush.bf16.msra.mxu0 %v1171
    %1836 = vmatpush.bf16.msra.mxu0 %v1167
    %1837 = vmatpush.bf16.msra.mxu0 %v1163
    %1838 = vmatmul.bf16.gmra.mxu0 %v350
    %v1839 = vpop.f32.mrf.mxu0
    %v1840 = vadd.f32 %v1826, %v1839
    %v1841 = vpop.f32.mrf.mxu0
    %v1842 = vadd.f32 %v1828, %v1841
    %1843 = vdwg.mxu0
    %1844 = vmatpush.bf16.msra.mxu0 %v1223
    %1845 = vmatpush.bf16.msra.mxu0 %v1219
    %1846 = vmatpush.bf16.msra.mxu0 %v1215
    %1847 = vmatpush.bf16.msra.mxu0 %v1211
    %1848 = vmatpush.bf16.msra.mxu0 %v1207
    %1849 = vmatpush.bf16.msra.mxu0 %v1203
    %1850 = vmatpush.bf16.msra.mxu0 %v1199
    %1851 = vmatpush.bf16.msra.mxu0 %v1195
    %1852 = vmatmul.bf16.gmra.mxu0 %v351
    %v1853 = vpop.f32.mrf.mxu0
    %v1854 = vadd.f32 %v1840, %v1853
    %v1855 = vpop.f32.mrf.mxu0
    %v1856 = vadd.f32 %v1842, %v1855
    %1857 = vdwg.mxu0
    %1858 = vmatpush.bf16.msra.mxu0 %v1255
    %1859 = vmatpush.bf16.msra.mxu0 %v1251
    %1860 = vmatpush.bf16.msra.mxu0 %v1247
    %1861 = vmatpush.bf16.msra.mxu0 %v1243
    %1862 = vmatpush.bf16.msra.mxu0 %v1239
    %1863 = vmatpush.bf16.msra.mxu0 %v1235
    %1864 = vmatpush.bf16.msra.mxu0 %v1231
    %1865 = vmatpush.bf16.msra.mxu0 %v1227
    %1866 = vmatmul.bf16.gmra.mxu0 %v352
    %v1867 = vpop.f32.mrf.mxu0
    %v1868 = vadd.f32 %v1854, %v1867
    %v1869 = vpop.f32.mrf.mxu0
    %v1870 = vadd.f32 %v1856, %v1869
    %1871 = vdwg.mxu0
    %v1872 = vmax.f32 %v1574, 0.0
    %v1873 = vmax.f32 %v1672, 0.0
    %v1874 = vmax.f32 %v1770, 0.0
    %v1875 = vmax.f32 %v1868, 0.0
    %v1876 = vmax.f32 %v1576, 0.0
    %v1877 = vmax.f32 %v1674, 0.0
    %v1878 = vmax.f32 %v1772, 0.0
    %v1879 = vmax.f32 %v1870, 0.0
    %v1880 = vpack.c.bf16 %v1876, %v1872
    %v1881 = vpack.c.bf16 %v1877, %v1873
    %v1882 = vpack.c.bf16 %v1878, %v1874
    %v1883 = vpack.c.bf16 %v1879, %v1875
    %v1884 = vld [vmem:[#allocation8] sm:$0xf]
    %v1885 = vld [vmem:[#allocation8 + $0x4] sm:$0xf]
    %v1886 = vld [vmem:[#allocation8 + $0x8] sm:$0xf]
    %v1887 = vld [vmem:[#allocation8 + $0xc] sm:$0xf]
    %v1888 = vld [vmem:[#allocation8 + $0x10] sm:$0xf]
    %v1889 = vld [vmem:[#allocation8 + $0x14] sm:$0xf]
    %v1890 = vld [vmem:[#allocation8 + $0x18] sm:$0xf]
    %v1891 = vld [vmem:[#allocation8 + $0x1c] sm:$0xf]
    %v1892 = vld [vmem:[#allocation8 + $0x20] sm:$0xf]
    %v1893 = vld [vmem:[#allocation8 + $0x24] sm:$0xf]
    %v1894 = vld [vmem:[#allocation8 + $0x28] sm:$0xf]
    %v1895 = vld [vmem:[#allocation8 + $0x2c] sm:$0xf]
    %v1896 = vld [vmem:[#allocation8 + $0x30] sm:$0xf]
    %v1897 = vld [vmem:[#allocation8 + $0x34] sm:$0xf]
    %v1898 = vld [vmem:[#allocation8 + $0x38] sm:$0xf]
    %v1899 = vld [vmem:[#allocation8 + $0x3c] sm:$0xf]
    %v1900 = vld [vmem:[#allocation8 + $0x40] sm:$0xf]
    %v1901 = vld [vmem:[#allocation8 + $0x44] sm:$0xf]
    %v1902 = vld [vmem:[#allocation8 + $0x48] sm:$0xf]
    %v1903 = vld [vmem:[#allocation8 + $0x4c] sm:$0xf]
    %v1904 = vld [vmem:[#allocation8 + $0x50] sm:$0xf]
    %v1905 = vld [vmem:[#allocation8 + $0x54] sm:$0xf]
    %v1906 = vld [vmem:[#allocation8 + $0x58] sm:$0xf]
    %v1907 = vld [vmem:[#allocation8 + $0x5c] sm:$0xf]
    %v1908 = vld [vmem:[#allocation8 + $0x60] sm:$0xf]
    %v1909 = vld [vmem:[#allocation8 + $0x64] sm:$0xf]
    %v1910 = vld [vmem:[#allocation8 + $0x68] sm:$0xf]
    %v1911 = vld [vmem:[#allocation8 + $0x6c] sm:$0xf]
    %v1912 = vld [vmem:[#allocation8 + $0x70] sm:$0xf]
    %v1913 = vld [vmem:[#allocation8 + $0x74] sm:$0xf]
    %v1914 = vld [vmem:[#allocation8 + $0x78] sm:$0xf]
    %v1915 = vld [vmem:[#allocation8 + $0x7c] sm:$0xf]
    %v1916 = vld [vmem:[#allocation8 + $0x80] sm:$0xf]
    %v1917 = vld [vmem:[#allocation8 + $0x84] sm:$0xf]
    %v1918 = vld [vmem:[#allocation8 + $0x88] sm:$0xf]
    %v1919 = vld [vmem:[#allocation8 + $0x8c] sm:$0xf]
    %v1920 = vld [vmem:[#allocation8 + $0x90] sm:$0xf]
    %v1921 = vld [vmem:[#allocation8 + $0x94] sm:$0xf]
    %v1922 = vld [vmem:[#allocation8 + $0x98] sm:$0xf]
    %v1923 = vld [vmem:[#allocation8 + $0x9c] sm:$0xf]
    %v1924 = vld [vmem:[#allocation8 + $0xa0] sm:$0xf]
    %v1925 = vld [vmem:[#allocation8 + $0xa4] sm:$0xf]
    %v1926 = vld [vmem:[#allocation8 + $0xa8] sm:$0xf]
    %v1927 = vld [vmem:[#allocation8 + $0xac] sm:$0xf]
    %v1928 = vld [vmem:[#allocation8 + $0xb0] sm:$0xf]
    %v1929 = vld [vmem:[#allocation8 + $0xb4] sm:$0xf]
    %v1930 = vld [vmem:[#allocation8 + $0xb8] sm:$0xf]
    %v1931 = vld [vmem:[#allocation8 + $0xbc] sm:$0xf]
    %v1932 = vld [vmem:[#allocation8 + $0xc0] sm:$0xf]
    %v1933 = vld [vmem:[#allocation8 + $0xc4] sm:$0xf]
    %v1934 = vld [vmem:[#allocation8 + $0xc8] sm:$0xf]
    %v1935 = vld [vmem:[#allocation8 + $0xcc] sm:$0xf]
    %v1936 = vld [vmem:[#allocation8 + $0xd0] sm:$0xf]
    %v1937 = vld [vmem:[#allocation8 + $0xd4] sm:$0xf]
    %v1938 = vld [vmem:[#allocation8 + $0xd8] sm:$0xf]
    %v1939 = vld [vmem:[#allocation8 + $0xdc] sm:$0xf]
    %v1940 = vld [vmem:[#allocation8 + $0xe0] sm:$0xf]
    %v1941 = vld [vmem:[#allocation8 + $0xe4] sm:$0xf]
    %v1942 = vld [vmem:[#allocation8 + $0xe8] sm:$0xf]
    %v1943 = vld [vmem:[#allocation8 + $0xec] sm:$0xf]
    %v1944 = vld [vmem:[#allocation8 + $0xf0] sm:$0xf]
    %v1945 = vld [vmem:[#allocation8 + $0xf4] sm:$0xf]
    %v1946 = vld [vmem:[#allocation8 + $0xf8] sm:$0xf]
    %v1947 = vld [vmem:[#allocation8 + $0xfc] sm:$0xf]
    %v1948 = vld [vmem:[%s4] sm:$0x1]
    %v1950 = vperm.slane %v1948, 0
    %v2016 = vunpack.c.l.b16 %v1884
    %v2017 = vunpack.c.l.b16 %v1885
    %v2018 = vunpack.c.l.b16 %v1886
    %v2019 = vunpack.c.l.b16 %v1887
    %v2020 = vunpack.c.l.b16 %v1888
    %v2021 = vunpack.c.l.b16 %v1889
    %v2022 = vunpack.c.l.b16 %v1890
    %v2023 = vunpack.c.l.b16 %v1891
    %v2024 = vunpack.c.l.b16 %v1892
    %v2025 = vunpack.c.l.b16 %v1893
    %v2026 = vunpack.c.l.b16 %v1894
    %v2027 = vunpack.c.l.b16 %v1895
    %v2028 = vunpack.c.l.b16 %v1896
    %v2029 = vunpack.c.l.b16 %v1897
    %v2030 = vunpack.c.l.b16 %v1898
    %v2031 = vunpack.c.l.b16 %v1899
    %v2032 = vunpack.c.l.b16 %v1900
    %v2033 = vunpack.c.l.b16 %v1901
    %v2034 = vunpack.c.l.b16 %v1902
    %v2035 = vunpack.c.l.b16 %v1903
    %v2036 = vunpack.c.l.b16 %v1904
    %v2037 = vunpack.c.l.b16 %v1905
    %v2038 = vunpack.c.l.b16 %v1906
    %v2039 = vunpack.c.l.b16 %v1907
    %v2040 = vunpack.c.l.b16 %v1908
    %v2041 = vunpack.c.l.b16 %v1909
    %v2042 = vunpack.c.l.b16 %v1910
    %v2043 = vunpack.c.l.b16 %v1911
    %v2044 = vunpack.c.l.b16 %v1912
    %v2045 = vunpack.c.l.b16 %v1913
    %v2046 = vunpack.c.l.b16 %v1914
    %v2047 = vunpack.c.l.b16 %v1915
    %v2048 = vunpack.c.l.b16 %v1916
    %v2049 = vunpack.c.l.b16 %v1917
    %v2050 = vunpack.c.l.b16 %v1918
    %v2051 = vunpack.c.l.b16 %v1919
    %v2052 = vunpack.c.l.b16 %v1920
    %v2053 = vunpack.c.l.b16 %v1921
    %v2054 = vunpack.c.l.b16 %v1922
    %v2055 = vunpack.c.l.b16 %v1923
    %v2056 = vunpack.c.l.b16 %v1924
    %v2057 = vunpack.c.l.b16 %v1925
    %v2058 = vunpack.c.l.b16 %v1926
    %v2059 = vunpack.c.l.b16 %v1927
    %v2060 = vunpack.c.l.b16 %v1928
    %v2061 = vunpack.c.l.b16 %v1929
    %v2062 = vunpack.c.l.b16 %v1930
    %v2063 = vunpack.c.l.b16 %v1931
    %v2064 = vunpack.c.l.b16 %v1932
    %v2065 = vunpack.c.l.b16 %v1933
    %v2066 = vunpack.c.l.b16 %v1934
    %v2067 = vunpack.c.l.b16 %v1935
    %v2068 = vunpack.c.l.b16 %v1936
    %v2069 = vunpack.c.l.b16 %v1937
    %v2070 = vunpack.c.l.b16 %v1938
    %v2071 = vunpack.c.l.b16 %v1939
    %v2072 = vunpack.c.l.b16 %v1940
    %v2073 = vunpack.c.l.b16 %v1941
    %v2074 = vunpack.c.l.b16 %v1942
    %v2075 = vunpack.c.l.b16 %v1943
    %v2076 = vunpack.c.l.b16 %v1944
    %v2077 = vunpack.c.l.b16 %v1945
    %v2078 = vunpack.c.l.b16 %v1946
    %v2079 = vunpack.c.l.b16 %v1947
    %v2080 = vpack.c.b16 %v2017, %v2016
    %v2081 = vpack.c.b16 %v2019, %v2018
    %v2082 = vpack.c.b16 %v2021, %v2020
    %v2083 = vpack.c.b16 %v2023, %v2022
    %v2084 = vpack.c.b16 %v2025, %v2024
    %v2085 = vpack.c.b16 %v2027, %v2026
    %v2086 = vpack.c.b16 %v2029, %v2028
    %v2087 = vpack.c.b16 %v2031, %v2030
    %v2088 = vpack.c.b16 %v2033, %v2032
    %v2089 = vpack.c.b16 %v2035, %v2034
    %v2090 = vpack.c.b16 %v2037, %v2036
    %v2091 = vpack.c.b16 %v2039, %v2038
    %v2092 = vpack.c.b16 %v2041, %v2040
    %v2093 = vpack.c.b16 %v2043, %v2042
    %v2094 = vpack.c.b16 %v2045, %v2044
    %v2095 = vpack.c.b16 %v2047, %v2046
    %v2096 = vpack.c.b16 %v2049, %v2048
    %v2097 = vpack.c.b16 %v2051, %v2050
    %v2098 = vpack.c.b16 %v2053, %v2052
    %v2099 = vpack.c.b16 %v2055, %v2054
    %v2100 = vpack.c.b16 %v2057, %v2056
    %v2101 = vpack.c.b16 %v2059, %v2058
    %v2102 = vpack.c.b16 %v2061, %v2060
    %v2103 = vpack.c.b16 %v2063, %v2062
    %v2104 = vpack.c.b16 %v2065, %v2064
    %v2105 = vpack.c.b16 %v2067, %v2066
    %v2106 = vpack.c.b16 %v2069, %v2068
    %v2107 = vpack.c.b16 %v2071, %v2070
    %v2108 = vpack.c.b16 %v2073, %v2072
    %v2109 = vpack.c.b16 %v2075, %v2074
    %v2110 = vpack.c.b16 %v2077, %v2076
    %v2111 = vpack.c.b16 %v2079, %v2078
    %2144 = vmatpush.bf16.msra.mxu0 %v2087
    %2145 = vmatpush.bf16.msra.mxu0 %v2086
    %2146 = vmatpush.bf16.msra.mxu0 %v2085
    %2147 = vmatpush.bf16.msra.mxu0 %v2084
    %2148 = vmatpush.bf16.msra.mxu0 %v2083
    %2149 = vmatpush.bf16.msra.mxu0 %v2082
    %2150 = vmatpush.bf16.msra.mxu0 %v2081
    %2151 = vmatpush.bf16.msra.mxu0 %v2080
    %2152 = vmatmul.bf16.gmra.mxu0 %v1880
    %v2153 = vpop.f32.mrf.mxu0
    %v2154 = vadd.f32 %v1950, %v2153
    %v2155 = vpop.f32.mrf.mxu0
    %v2156 = vadd.f32 %v1950, %v2155
    %2157 = vdwg.mxu0
    %2158 = vmatpush.bf16.msra.mxu0 %v2095
    %2159 = vmatpush.bf16.msra.mxu0 %v2094
    %2160 = vmatpush.bf16.msra.mxu0 %v2093
    %2161 = vmatpush.bf16.msra.mxu0 %v2092
    %2162 = vmatpush.bf16.msra.mxu0 %v2091
    %2163 = vmatpush.bf16.msra.mxu0 %v2090
    %2164 = vmatpush.bf16.msra.mxu0 %v2089
    %2165 = vmatpush.bf16.msra.mxu0 %v2088
    %2166 = vmatmul.bf16.gmra.mxu0 %v1881
    %v2167 = vpop.f32.mrf.mxu0
    %v2168 = vadd.f32 %v2154, %v2167
    %v2169 = vpop.f32.mrf.mxu0
    %v2170 = vadd.f32 %v2156, %v2169
    %2171 = vdwg.mxu0
    %2172 = vmatpush.bf16.msra.mxu0 %v2103
    %2173 = vmatpush.bf16.msra.mxu0 %v2102
    %2174 = vmatpush.bf16.msra.mxu0 %v2101
    %2175 = vmatpush.bf16.msra.mxu0 %v2100
    %2176 = vmatpush.bf16.msra.mxu0 %v2099
    %2177 = vmatpush.bf16.msra.mxu0 %v2098
    %2178 = vmatpush.bf16.msra.mxu0 %v2097
    %2179 = vmatpush.bf16.msra.mxu0 %v2096
    %2180 = vmatmul.bf16.gmra.mxu0 %v1882
    %v2181 = vpop.f32.mrf.mxu0
    %v2182 = vadd.f32 %v2168, %v2181
    %v2183 = vpop.f32.mrf.mxu0
    %v2184 = vadd.f32 %v2170, %v2183
    %2185 = vdwg.mxu0
    %2186 = vmatpush.bf16.msra.mxu0 %v2111
    %2187 = vmatpush.bf16.msra.mxu0 %v2110
    %2188 = vmatpush.bf16.msra.mxu0 %v2109
    %2189 = vmatpush.bf16.msra.mxu0 %v2108
    %2190 = vmatpush.bf16.msra.mxu0 %v2107
    %2191 = vmatpush.bf16.msra.mxu0 %v2106
    %2192 = vmatpush.bf16.msra.mxu0 %v2105
    %2193 = vmatpush.bf16.msra.mxu0 %v2104
    %2194 = vmatmul.bf16.gmra.mxu0 %v1883
    %v2195 = vpop.f32.mrf.mxu0
    %v2196 = vadd.f32 %v2182, %v2195
    %v2197 = vpop.f32.mrf.mxu0
    %v2198 = vadd.f32 %v2184, %v2197
    %2199 = vdwg.mxu0
    %2200 = vst [vmem:[#allocation10] sm:$0xff] %v2196
    %2201 = vst [vmem:[#allocation10 + $0x8] sm:$0xff] %v2198
    // Predicated region
    $region38: #{tpu_custom_call.1} parent=1 // pred_check
      _
    $region39: #{tpu_custom_call.1} parent=1 // pred_check_branch
      %2203 = sbr.rel (0) target = $region41
    $region40: #{tpu_custom_call.1} parent=1 // pred_region
      %2205 = vsyncadd [#allocation4], 0
      %s2206 = sshll.u32 [#allocation10], 4
      %s2207 = int_to_ptr.vmem [resolvable:$true] %s2206
      %s2208 = sshll.u32 %s5, 4
      %s2209 = int_to_ptr.hbm [resolvable:$true] %s2208
      %2214 = dma.vmem_to_hbm [thread:$0]  %s2207, 256, %s2209, [#allocation4], 128, 128, 8
    $region41: #{tpu_custom_call.1} parent=1 // pred_fallthru
      _
    // Predicated region
    $region42: #{tpu_custom_call.1} parent=1 // pred_check
      _
    $region43: #{tpu_custom_call.1} parent=1 // pred_check_branch
      %2216 = sbr.rel (0) target = $region45
    $region44: #{tpu_custom_call.1} parent=1 // pred_region
      %2218 = dma.done [#allocation4], 256
    $region45: #{tpu_custom_call.1} parent=1 // pred_fallthru
      _
    %2219 = vsyncpa [#allocation3], 1
    %2220 = vsyncpa [#allocation6], 1
    %2221 = vsyncpa [#allocation9], 1
    %2222 = vsyncpa [#allocation4], 1

</llo_original>
